<compile_context>
chip_gen: v7x
topology: tpu7x:2x2x1
jax: 0.10.0
libtpu: 0.0.40
codegen_flags: <defaults>
</compile_context>

<pallas_src>
import functools

import numpy as np
import jax
import jax.numpy as jnp
from jax import lax
from jax.experimental import pallas as pl
from jax.experimental.pallas import tpu as pltpu


# Safe on every generation: < 64 MiB (v7x physical), < 128 MiB (v5e/v6e physical).
_VMEM_LIMIT_BYTES = 48 * 1024 * 1024


def _pick_tile(total, candidates):
    """Largest candidate that evenly divides `total`, else the full extent."""
    for t in candidates:
        if t <= total and total % t == 0:
            return t
    return total


# --------------------------------------------------------------------------
# Linear projection kernels (x @ W [+ b]), tiled over M and Nout
# --------------------------------------------------------------------------
def _linear_bias_kernel(x_ref, w_ref, b_ref, o_ref):
    acc = jnp.dot(x_ref[...], w_ref[...], preferred_element_type=jnp.float32)
    o_ref[...] = (acc + b_ref[...].astype(jnp.float32)).astype(o_ref.dtype)


def _linear_nobias_kernel(x_ref, w_ref, o_ref):
    acc = jnp.dot(x_ref[...], w_ref[...], preferred_element_type=jnp.float32)
    o_ref[...] = acc.astype(o_ref.dtype)


def linear_pallas(x2d, w, b=None):
    """x2d: (M, K), w: (K, Nout), b: (Nout,) or None -> (M, Nout)."""
    M, K = x2d.shape
    Kw, Nout = w.shape
    assert K == Kw

    bm = _pick_tile(M, (512, 256, 128))       # amortize per-step overhead with big M tiles
    bn = _pick_tile(Nout, (512, 256, 128))    # tile the weight's output dim -> bounded VMEM
    grid = (M // bm, Nout // bn)

    x_spec = pl.BlockSpec((bm, K), lambda i, j: (i, 0))      # resident across Nout tiles
    w_spec = pl.BlockSpec((K, bn), lambda i, j: (0, j))
    o_spec = pl.BlockSpec((bm, bn), lambda i, j: (i, j))
    cparams = pltpu.CompilerParams(
        dimension_semantics=("parallel", "parallel"),
        vmem_limit_bytes=_VMEM_LIMIT_BYTES,
    )
    out_shape = jax.ShapeDtypeStruct((M, Nout), x2d.dtype)

    if b is None:
        return pl.pallas_call(
            _linear_nobias_kernel,
            out_shape=out_shape,
            grid=grid,
            in_specs=[x_spec, w_spec],
            out_specs=o_spec,
            compiler_params=cparams,
        )(x2d, w)

    b2d = b.reshape(1, Nout).astype(jnp.float32)
    b_spec = pl.BlockSpec((1, bn), lambda i, j: (0, j))
    return pl.pallas_call(
        _linear_bias_kernel,
        out_shape=out_shape,
        grid=grid,
        in_specs=[x_spec, w_spec, b_spec],
        out_specs=o_spec,
        compiler_params=cparams,
    )(x2d, w, b2d)


# --------------------------------------------------------------------------
# Attention core kernel: grid = (batch, head, q-tile).
#   q block (1, tq, D), k/v blocks (1, N, D) carved from the packed (B, N, 3C) qkv
#   activation; per-head (tq, N) bias tile streamed per step; lane-dense (tq, D)
#   output block written directly in the final (B, N, C) layout.
# --------------------------------------------------------------------------
def _attn_kernel(q_ref, k_ref, v_ref, bias_ref, o_ref, *, scale):
    q = q_ref[0] * scale                                   # (tq, D) -- scale folded into q
    k = k_ref[0]                                           # (N, D)
    v = v_ref[0]                                           # (N, D)

    # q @ k^T: contract the last dims (no materialized transpose of k); f32 accumulate.
    s = lax.dot_general(q, k, (((1,), (1,)), ((), ())),
                        preferred_element_type=jnp.float32)        # (tq, N)
    s = s + bias_ref[0].astype(jnp.float32)
    s = s - jnp.max(s, axis=-1, keepdims=True)
    # TODO(synk): on v6e/v7x the exp could run in bf16 (EUP bf16) to halve EUP pressure.
    p = jnp.exp(s)
    l = jnp.sum(p, axis=-1, keepdims=True)                          # (tq, 1)

    # PV matmul in the activation dtype (bf16 inputs -> bf16 MXU operands), f32 accumulate,
    # then normalize AFTER the matmul: O(tq*D) multiplies instead of O(tq*N).
    o = jnp.dot(p.astype(v.dtype), v, preferred_element_type=jnp.float32)  # (tq, D)
    o = o * pl.reciprocal(l, approx=True)                  # divide on the EUP slot
    o_ref[0] = o.astype(o_ref.dtype)


def attention_core_pallas(qkv, rel_bias, num_heads, scale, block_q=None):
    """qkv: (B, N, 3C) packed projection; rel_bias: (H, N, N) -> (B, N, C)."""
    B, N, C3 = qkv.shape
    C = C3 // 3
    H = num_heads
    assert C % H == 0
    D = C // H
    # NOTE: per-head channel blocks are fully lane-aligned when D is a multiple of 128
    # (demo uses D=128); smaller D still lowers but with masked / relayout accesses.

    if block_q is None:
        block_q = _pick_tile(N, (512, 256, 128))
    tq = block_q
    assert N % tq == 0 and (tq % 8 == 0 or tq == N)
    nq = N // tq

    q_spec = pl.BlockSpec((1, tq, D), lambda b, h, qi: (b, qi, h))
    k_spec = pl.BlockSpec((1, N, D), lambda b, h, qi: (b, 0, H + h))       # resident over qi
    v_spec = pl.BlockSpec((1, N, D), lambda b, h, qi: (b, 0, 2 * H + h))   # resident over qi
    bias_spec = pl.BlockSpec((1, tq, N), lambda b, h, qi: (h, qi, 0))      # streamed per head
    o_spec = pl.BlockSpec((1, tq, D), lambda b, h, qi: (b, qi, h))         # lane-dense write

    kernel = functools.partial(_attn_kernel, scale=scale)
    return pl.pallas_call(
        kernel,
        out_shape=jax.ShapeDtypeStruct((B, N, C), qkv.dtype),
        grid=(B, H, nq),
        in_specs=[q_spec, k_spec, v_spec, bias_spec],
        out_specs=o_spec,
        compiler_params=pltpu.CompilerParams(
            dimension_semantics=("parallel", "parallel", "parallel"),
            vmem_limit_bytes=_VMEM_LIMIT_BYTES,
        ),
    )(qkv, qkv, qkv, rel_bias)


# --------------------------------------------------------------------------
# RelativePositionBias setup (glue, matches the PyTorch buffer construction)
# --------------------------------------------------------------------------
def make_relative_position_index(window_size):
    wh, ww = window_size
    coords = np.stack(np.meshgrid(np.arange(wh), np.arange(ww), indexing="ij"))  # (2, wh, ww)
    coords_flatten = coords.reshape(2, -1)                                        # (2, wh*ww)
    rel = coords_flatten[:, :, None] - coords_flatten[:, None, :]                 # (2, N, N)
    rel = rel.transpose(1, 2, 0).astype(np.int64)                                 # (N, N, 2)
    rel[:, :, 0] += wh - 1
    rel[:, :, 1] += ww - 1
    rel[:, :, 0] *= 2 * ww - 1
    return rel.sum(-1)                                                            # (N, N)


def compute_rel_bias(params, N, num_heads):
    """Table gather + (N,N,H)->(H,N,N) permute.  Precompute ONCE outside the forward path."""
    idx = params["rel_index"].reshape(-1)
    return params["rel_table"][idx].reshape(N, N, num_heads).transpose(2, 0, 1)


# --------------------------------------------------------------------------
# Parameter init + full forward
# --------------------------------------------------------------------------
def init_params(key, dim, num_heads, num_patches, qkv_bias=False):
    ws = int(num_patches ** 0.5)
    window_size = (ws, ws)
    num_rel_dist = (2 * ws - 1) * (2 * ws - 1) + 3
    k1, k2, k3, k4, k5 = jax.random.split(key, 5)
    params = {
        "w_qkv": jax.random.normal(k1, (dim, dim * 3), jnp.float32) * 0.02,
        "b_qkv": (jax.random.normal(k2, (dim * 3,), jnp.float32) * 0.02) if qkv_bias else None,
        "w_proj": jax.random.normal(k3, (dim, dim), jnp.float32) * 0.02,
        "b_proj": jax.random.normal(k4, (dim,), jnp.float32) * 0.02,
        # trunc_normal_(std=0.02) equivalent
        "rel_table": 0.02 * jax.random.truncated_normal(
            k5, -2.0, 2.0, (num_rel_dist, num_heads), jnp.float32
        ),
        "rel_index": jnp.asarray(make_relative_position_index(window_size), dtype=jnp.int32),
    }
    return params


@functools.partial(jax.jit, static_argnames=("num_heads", "block_q"))
def attention_forward(params, x, rel_bias, *, num_heads, block_q=None):
    B, N, C = x.shape
    D = C // num_heads
    scale = D ** (-0.5)

    # qkv projection (tiled Pallas matmul) -> packed (B, N, 3C), natural layout (no transpose)
    x2d = x.reshape(B * N, C)
    qkv = linear_pallas(x2d, params["w_qkv"], params["b_qkv"]).reshape(B, N, 3 * C)

    # scaled dot-product attention with relative position bias (Pallas),
    # output already in (B, N, C) layout -> feeds the projection directly.
    out = attention_core_pallas(qkv, rel_bias, num_heads, scale, block_q=block_q)  # (B, N, C)

    # output projection (Pallas matmul). attn_drop / proj_drop have p=0.0 -> identity.
    out = linear_pallas(out.reshape(B * N, C), params["w_proj"], params["b_proj"])
    return out.reshape(B, N, C)


# --------------------------------------------------------------------------
# Pure-JAX reference for correctness checking
# --------------------------------------------------------------------------
def attention_reference(params, x, num_heads):
    B, N, C = x.shape
    H = num_heads
    D = C // H
    scale = D ** (-0.5)
    rel_bias = compute_rel_bias(params, N, H)

    qkv = x.reshape(B * N, C) @ params["w_qkv"]
    if params["b_qkv"] is not None:
        qkv = qkv + params["b_qkv"]
    qkv = qkv.reshape(B, N, 3, H, D).transpose(2, 0, 3, 1, 4)
    q, k, v = qkv[0], qkv[1], qkv[2]
    attn = jnp.einsum("bhnd,bhmd->bhnm", q, k) * scale + rel_bias[None]
    attn = jax.nn.softmax(attn, axis=-1)
    out = jnp.einsum("bhnm,bhmd->bhnd", attn, v)
    out = out.transpose(0, 2, 1, 3).reshape(B * N, C)
    out = out @ params["w_proj"] + params["b_proj"]
    return out.reshape(B, N, C)


# --------------------------------------------------------------------------
if __name__ == "__main__":
    B = 2
    num_patches = 64          # -> window (8, 8), N = 64 tokens
    N = num_patches
    dim = 256                 # head_dim D = 128 -> lane-dense per-head blocks
    num_heads = 2

    key = jax.random.PRNGKey(0)
    kp, kx = jax.random.split(key)
    params = init_params(kp, dim, num_heads, num_patches, qkv_bias=False)
    x = jax.random.normal(kx, (B, N, dim), jnp.float32)

    # Precompute (cache) the relative-position bias once, outside the steady-state forward path.
    rel_bias = compute_rel_bias(params, N, num_heads)

    out = attention_forward(params, x, rel_bias, num_heads=num_heads, block_q=32)
    out = jax.block_until_ready(out)

    ref = attention_reference(params, x, num_heads)
    np.testing.assert_allclose(np.asarray(out), np.asarray(ref), rtol=2e-3, atol=2e-4)

    print("KERNEL_OK")
</pallas_src>

<mosaic_0001>
module attributes {stable_mosaic.version = 11 : i64} {
  func.func @_linear_nobias_kernel(%arg0: i32, %arg1: i32, %arg2: memref<128x256xf32, #tpu.memory_space<vmem>>, %arg3: memref<256x256xf32, #tpu.memory_space<vmem>>, %arg4: memref<128x256xf32, #tpu.memory_space<vmem>>) attributes {dimension_semantics = [#tpu.dimension_semantics<parallel>, #tpu.dimension_semantics<parallel>], iteration_bounds = array<i64: 1, 3>, scalar_prefetch = 0 : i64, scratch_operands = 0 : i64, tpu.core_type = #tpu.core_type<tc>, window_params = [{transform_indices = @transform_0, window_bounds = array<i64: 128, 256>}, {transform_indices = @transform_1, window_bounds = array<i64: 256, 256>}, {transform_indices = @transform_2, window_bounds = array<i64: 128, 256>}]} {
    %c0 = arith.constant 0 : index
    %c0_0 = arith.constant 0 : index
    %0 = vector.load %arg2[%c0, %c0_0] : memref<128x256xf32, #tpu.memory_space<vmem>>, vector<128x256xf32>
    %c0_1 = arith.constant 0 : index
    %c0_2 = arith.constant 0 : index
    %1 = vector.load %arg3[%c0_1, %c0_2] : memref<256x256xf32, #tpu.memory_space<vmem>>, vector<256x256xf32>
    %cst = arith.constant dense<0.000000e+00> : vector<128x256xf32>
    %2 = tpu.matmul %0, %1, %cst {dimension_numbers = #tpu.dot_dimension_numbers<[1], [0], [0], [1], [0, 0, 1, 1], [], []>} : vector<128x256xf32>, vector<256x256xf32>, vector<128x256xf32> -> vector<128x256xf32>
    %c0_3 = arith.constant 0 : index
    %c0_4 = arith.constant 0 : index
    %3 = vector.load %arg4[%c0_3, %c0_4] : memref<128x256xf32, #tpu.memory_space<vmem>>, vector<128x256xf32>
    tpu.vector_store %arg4[%c0_3, %c0_4], %2 {strides = array<i32>} : memref<128x256xf32, #tpu.memory_space<vmem>>, vector<128x256xf32>,
    return
  }
  func.func @transform_0(%arg0: i32, %arg1: i32) -> (i32, i32) {
    %c0_i32 = arith.constant 0 : i32
    %c0_i32_0 = arith.constant 0 : i32
    return %arg0, %c0_i32 : i32, i32
  }
  func.func @transform_1(%arg0: i32, %arg1: i32) -> (i32, i32) {
    %c0_i32 = arith.constant 0 : i32
    %c0_i32_0 = arith.constant 0 : i32
    return %c0_i32, %arg1 : i32, i32
  }
  func.func @transform_2(%arg0: i32, %arg1: i32) -> (i32, i32) {
    %c0_i32 = arith.constant 0 : i32
    return %arg0, %arg1 : i32, i32
  }
}

module attributes {stable_mosaic.version = 11 : i64} {
  func.func @_attn_kernel(%arg0: i32, %arg1: i32, %arg2: i32, %arg3: memref<1x32x128xf32, #tpu.memory_space<vmem>>, %arg4: memref<1x64x128xf32, #tpu.memory_space<vmem>>, %arg5: memref<1x64x128xf32, #tpu.memory_space<vmem>>, %arg6: memref<1x32x64xf32, #tpu.memory_space<vmem>>, %arg7: memref<1x32x128xf32, #tpu.memory_space<vmem>>) attributes {dimension_semantics = [#tpu.dimension_semantics<parallel>, #tpu.dimension_semantics<parallel>, #tpu.dimension_semantics<parallel>], iteration_bounds = array<i64: 2, 2, 2>, scalar_prefetch = 0 : i64, scratch_operands = 0 : i64, tpu.core_type = #tpu.core_type<tc>, window_params = [{transform_indices = @transform_0, window_bounds = array<i64: 1, 32, 128>}, {transform_indices = @transform_1, window_bounds = array<i64: 1, 64, 128>}, {transform_indices = @transform_2, window_bounds = array<i64: 1, 64, 128>}, {transform_indices = @transform_3, window_bounds = array<i64: 1, 32, 64>}, {transform_indices = @transform_4, window_bounds = array<i64: 1, 32, 128>}]} {
    %c0 = arith.constant 0 : index
    %c0_0 = arith.constant 0 : index
    %c0_1 = arith.constant 0 : index
    %0 = vector.load %arg3[%c0, %c0_0, %c0_1] : memref<1x32x128xf32, #tpu.memory_space<vmem>>, vector<1x32x128xf32>
    %1 = vector.shape_cast %0 : vector<1x32x128xf32> to vector<32x128xf32>
    %cst = arith.constant 0.0883883461 : f32
    %2 = vector.broadcast %cst : f32 to vector<32x128xf32>
    %3 = arith.mulf %1, %2 : vector<32x128xf32>
    %c0_2 = arith.constant 0 : index
    %c0_3 = arith.constant 0 : index
    %c0_4 = arith.constant 0 : index
    %4 = vector.load %arg4[%c0_2, %c0_3, %c0_4] : memref<1x64x128xf32, #tpu.memory_space<vmem>>, vector<1x64x128xf32>
    %5 = vector.shape_cast %4 : vector<1x64x128xf32> to vector<64x128xf32>
    %c0_5 = arith.constant 0 : index
    %c0_6 = arith.constant 0 : index
    %c0_7 = arith.constant 0 : index
    %6 = vector.load %arg5[%c0_5, %c0_6, %c0_7] : memref<1x64x128xf32, #tpu.memory_space<vmem>>, vector<1x64x128xf32>
    %7 = vector.shape_cast %6 : vector<1x64x128xf32> to vector<64x128xf32>
    %cst_8 = arith.constant dense<0.000000e+00> : vector<32x64xf32>
    %8 = tpu.matmul %3, %5, %cst_8 {dimension_numbers = #tpu.dot_dimension_numbers<[1], [1], [0], [0], [0, 0, 1, 0], [], []>} : vector<32x128xf32>, vector<64x128xf32>, vector<32x64xf32> -> vector<32x64xf32>
    %c0_9 = arith.constant 0 : index
    %c0_10 = arith.constant 0 : index
    %c0_11 = arith.constant 0 : index
    %9 = vector.load %arg6[%c0_9, %c0_10, %c0_11] : memref<1x32x64xf32, #tpu.memory_space<vmem>>, vector<1x32x64xf32>
    %10 = vector.shape_cast %9 : vector<1x32x64xf32> to vector<32x64xf32>
    %11 = arith.addf %8, %10 : vector<32x64xf32>
    %cst_12 = arith.constant dense<0xFF800000> : vector<32xf32>
    %12 = vector.multi_reduction <maximumf>, %11, %cst_12 [1] : vector<32x64xf32> to vector<32xf32>
    %13 = vector.shape_cast %12 : vector<32xf32> to vector<32x1xf32>
    %14 = vector.broadcast %13 : vector<32x1xf32> to vector<32x64xf32>
    %15 = arith.subf %11, %14 : vector<32x64xf32>
    %16 = math.exp %15 : vector<32x64xf32>
    %cst_13 = arith.constant dense<0.000000e+00> : vector<32xf32>
    %17 = vector.multi_reduction <add>, %16, %cst_13 [1] : vector<32x64xf32> to vector<32xf32>
    %18 = vector.shape_cast %17 : vector<32xf32> to vector<32x1xf32>
    %cst_14 = arith.constant dense<0.000000e+00> : vector<32x128xf32>
    %19 = tpu.matmul %16, %7, %cst_14 {dimension_numbers = #tpu.dot_dimension_numbers<[1], [0], [0], [1], [0, 0, 1, 1], [], []>} : vector<32x64xf32>, vector<64x128xf32>, vector<32x128xf32> -> vector<32x128xf32>
    %20 = tpu.reciprocal %18 {approx = true} : vector<32x1xf32> -> vector<32x1xf32>
    %21 = vector.broadcast %20 : vector<32x1xf32> to vector<32x128xf32>
    %22 = arith.mulf %19, %21 : vector<32x128xf32>
    %c0_15 = arith.constant 0 : index
    %c0_16 = arith.constant 0 : index
    %c0_17 = arith.constant 0 : index
    %23 = vector.load %arg7[%c0_15, %c0_16, %c0_17] : memref<1x32x128xf32, #tpu.memory_space<vmem>>, vector<1x32x128xf32>
    %24 = vector.shape_cast %23 : vector<1x32x128xf32> to vector<32x128xf32>
    %25 = vector.shape_cast %22 : vector<32x128xf32> to vector<1x32x128xf32>
    tpu.vector_store %arg7[%c0_15, %c0_16, %c0_17], %25 {strides = array<i32>} : memref<1x32x128xf32, #tpu.memory_space<vmem>>, vector<1x32x128xf32>,
    return
  }
  func.func @transform_0(%arg0: i32, %arg1: i32, %arg2: i32) -> (i32, i32, i32) {
    %c0_i32 = arith.constant 0 : i32
    return %arg0, %arg2, %arg1 : i32, i32, i32
  }
  func.func @transform_1(%arg0: i32, %arg1: i32, %arg2: i32) -> (i32, i32, i32) {
    %c2_i32 = arith.constant 2 : i32
    %0 = arith.addi %c2_i32, %arg1 : i32
    %c0_i32 = arith.constant 0 : i32
    %c0_i32_0 = arith.constant 0 : i32
    return %arg0, %c0_i32, %0 : i32, i32, i32
  }
  func.func @transform_2(%arg0: i32, %arg1: i32, %arg2: i32) -> (i32, i32, i32) {
    %c4_i32 = arith.constant 4 : i32
    %0 = arith.addi %c4_i32, %arg1 : i32
    %c0_i32 = arith.constant 0 : i32
    %c0_i32_0 = arith.constant 0 : i32
    return %arg0, %c0_i32, %0 : i32, i32, i32
  }
  func.func @transform_3(%arg0: i32, %arg1: i32, %arg2: i32) -> (i32, i32, i32) {
    %c0_i32 = arith.constant 0 : i32
    %c0_i32_0 = arith.constant 0 : i32
    return %arg1, %arg2, %c0_i32 : i32, i32, i32
  }
  func.func @transform_4(%arg0: i32, %arg1: i32, %arg2: i32) -> (i32, i32, i32) {
    %c0_i32 = arith.constant 0 : i32
    return %arg0, %arg2, %arg1 : i32, i32, i32
  }
}

module attributes {stable_mosaic.version = 11 : i64} {
  func.func @_linear_bias_kernel(%arg0: i32, %arg1: i32, %arg2: memref<128x256xf32, #tpu.memory_space<vmem>>, %arg3: memref<256x256xf32, #tpu.memory_space<vmem>>, %arg4: memref<1x256xf32, #tpu.memory_space<vmem>>, %arg5: memref<128x256xf32, #tpu.memory_space<vmem>>) attributes {dimension_semantics = [#tpu.dimension_semantics<parallel>, #tpu.dimension_semantics<parallel>], iteration_bounds = array<i64: 1, 1>, scalar_prefetch = 0 : i64, scratch_operands = 0 : i64, tpu.core_type = #tpu.core_type<tc>, window_params = [{transform_indices = @transform_0, window_bounds = array<i64: 128, 256>}, {transform_indices = @transform_1, window_bounds = array<i64: 256, 256>}, {transform_indices = @transform_2, window_bounds = array<i64: 1, 256>}, {transform_indices = @transform_3, window_bounds = array<i64: 128, 256>}]} {
    %c0 = arith.constant 0 : index
    %c0_0 = arith.constant 0 : index
    %0 = vector.load %arg2[%c0, %c0_0] : memref<128x256xf32, #tpu.memory_space<vmem>>, vector<128x256xf32>
    %c0_1 = arith.constant 0 : index
    %c0_2 = arith.constant 0 : index
    %1 = vector.load %arg3[%c0_1, %c0_2] : memref<256x256xf32, #tpu.memory_space<vmem>>, vector<256x256xf32>
    %cst = arith.constant dense<0.000000e+00> : vector<128x256xf32>
    %2 = tpu.matmul %0, %1, %cst {dimension_numbers = #tpu.dot_dimension_numbers<[1], [0], [0], [1], [0, 0, 1, 1], [], []>} : vector<128x256xf32>, vector<256x256xf32>, vector<128x256xf32> -> vector<128x256xf32>
    %c0_3 = arith.constant 0 : index
    %c0_4 = arith.constant 0 : index
    %3 = vector.load %arg4[%c0_3, %c0_4] : memref<1x256xf32, #tpu.memory_space<vmem>>, vector<1x256xf32>
    %4 = vector.broadcast %3 : vector<1x256xf32> to vector<128x256xf32>
    %5 = arith.addf %2, %4 : vector<128x256xf32>
    %c0_5 = arith.constant 0 : index
    %c0_6 = arith.constant 0 : index
    %6 = vector.load %arg5[%c0_5, %c0_6] : memref<128x256xf32, #tpu.memory_space<vmem>>, vector<128x256xf32>
    tpu.vector_store %arg5[%c0_5, %c0_6], %5 {strides = array<i32>} : memref<128x256xf32, #tpu.memory_space<vmem>>, vector<128x256xf32>,
    return
  }
  func.func @transform_0(%arg0: i32, %arg1: i32) -> (i32, i32) {
    %c0_i32 = arith.constant 0 : i32
    %c0_i32_0 = arith.constant 0 : i32
    return %arg0, %c0_i32 : i32, i32
  }
  func.func @transform_1(%arg0: i32, %arg1: i32) -> (i32, i32) {
    %c0_i32 = arith.constant 0 : i32
    %c0_i32_0 = arith.constant 0 : i32
    return %c0_i32, %arg1 : i32, i32
  }
  func.func @transform_2(%arg0: i32, %arg1: i32) -> (i32, i32) {
    %c0_i32 = arith.constant 0 : i32
    %c0_i32_0 = arith.constant 0 : i32
    return %c0_i32, %arg1 : i32, i32
  }
  func.func @transform_3(%arg0: i32, %arg1: i32) -> (i32, i32) {
    %c0_i32 = arith.constant 0 : i32
    return %arg0, %arg1 : i32, i32
  }
}

</mosaic_0001>

<llo_original>
// kernel: attention_forward.5
$region0: #{attention_forward.5}
  #allocation0 [shape = 'u32[]', space=smem, size = 0x4, offset = 0x4, fixed_abs, tag = 'smem constant byte address 0x4 - core index']
  #allocation1 [shape = 'u32[144,128]{1,0:T(1,128)}', space=vmem, size = 0x12000, scoped, tag = 'internal scratch']
  %s0 = inlined_call_operand.vmem [shape: f32[128,256], index: 0, kind: input, shape index: {}]
  %s1 = inlined_call_operand.vmem [shape: f32[256,256], index: 1, kind: input, shape index: {}]
  %s2 = inlined_call_operand.vmem [shape: f32[1,256], index: 2, kind: input, shape index: {}]
  %s3 = inlined_call_operand.hbm [shape: f32[128,256], index: 3, kind: output, shape index: {}]
  %s4 = sld [smem:[#allocation0]]
  $region22: #{attention_forward.5} parent=0
    _
  %s6 = ssub.s32 1, %s4
  %s7 = scalar_select 0, %s6, %s4
  $region1: #{attention_forward.5} parent=0
    #allocation2 [shape = 'u8[131072]{0}', space=vmem, size = 0x20000, scoped, tag = 'output window, operand 0, single buffered']
    #allocation3 [shape = 's32[1]{0}', space=sflag, size = 0x4, scoped, tag = 'scoped memory for attention_forward.5']
    %8 = vsyncpa [#allocation3], 0
    // Predicated region
    $region2: #{attention_forward.5} parent=1 // pred_check
      _
    $region3: #{attention_forward.5} parent=1 // pred_check_branch
      %10 = sbr.rel (0) target = $region5
    $region4: #{attention_forward.5} parent=1 // pred_region
      _
    $region5: #{attention_forward.5} parent=1 // pred_fallthru
      _
    // Predicated region
    $region6: #{attention_forward.5} parent=1 // pred_check
      _
    $region7: #{attention_forward.5} parent=1 // pred_check_branch
      %12 = sbr.rel (0) target = $region9
    $region8: #{attention_forward.5} parent=1 // pred_region
      _
    $region9: #{attention_forward.5} parent=1 // pred_fallthru
      _
    // Predicated region
    $region10: #{attention_forward.5} parent=1 // pred_check
      _
    $region11: #{attention_forward.5} parent=1 // pred_check_branch
      %14 = sbr.rel (0) target = $region13
    $region12: #{attention_forward.5} parent=1 // pred_region
      _
    $region13: #{attention_forward.5} parent=1 // pred_fallthru
      _
    %v15 = vld [vmem:[%s0] sm:$0xff]
    %v16 = vld [vmem:[%s0 + $0x8] sm:$0xff]
    %v17 = vld [vmem:[%s0 + $0x10] sm:$0xff]
    %v18 = vld [vmem:[%s0 + $0x18] sm:$0xff]
    %v19 = vld [vmem:[%s0 + $0x20] sm:$0xff]
    %v20 = vld [vmem:[%s0 + $0x28] sm:$0xff]
    %v21 = vld [vmem:[%s0 + $0x30] sm:$0xff]
    %v22 = vld [vmem:[%s0 + $0x38] sm:$0xff]
    %v23 = vld [vmem:[%s0 + $0x40] sm:$0xff]
    %v24 = vld [vmem:[%s0 + $0x48] sm:$0xff]
    %v25 = vld [vmem:[%s0 + $0x50] sm:$0xff]
    %v26 = vld [vmem:[%s0 + $0x58] sm:$0xff]
    %v27 = vld [vmem:[%s0 + $0x60] sm:$0xff]
    %v28 = vld [vmem:[%s0 + $0x68] sm:$0xff]
    %v29 = vld [vmem:[%s0 + $0x70] sm:$0xff]
    %v30 = vld [vmem:[%s0 + $0x78] sm:$0xff]
    %v31 = vld [vmem:[%s0 + $0x80] sm:$0xff]
    %v32 = vld [vmem:[%s0 + $0x88] sm:$0xff]
    %v33 = vld [vmem:[%s0 + $0x90] sm:$0xff]
    %v34 = vld [vmem:[%s0 + $0x98] sm:$0xff]
    %v35 = vld [vmem:[%s0 + $0xa0] sm:$0xff]
    %v36 = vld [vmem:[%s0 + $0xa8] sm:$0xff]
    %v37 = vld [vmem:[%s0 + $0xb0] sm:$0xff]
    %v38 = vld [vmem:[%s0 + $0xb8] sm:$0xff]
    %v39 = vld [vmem:[%s0 + $0xc0] sm:$0xff]
    %v40 = vld [vmem:[%s0 + $0xc8] sm:$0xff]
    %v41 = vld [vmem:[%s0 + $0xd0] sm:$0xff]
    %v42 = vld [vmem:[%s0 + $0xd8] sm:$0xff]
    %v43 = vld [vmem:[%s0 + $0xe0] sm:$0xff]
    %v44 = vld [vmem:[%s0 + $0xe8] sm:$0xff]
    %v45 = vld [vmem:[%s0 + $0xf0] sm:$0xff]
    %v46 = vld [vmem:[%s0 + $0xf8] sm:$0xff]
    %v47 = vld [vmem:[%s1] sm:$0xff]
    %v48 = vld [vmem:[%s1 + $0x8] sm:$0xff]
    %v49 = vld [vmem:[%s1 + $0x10] sm:$0xff]
    %v50 = vld [vmem:[%s1 + $0x18] sm:$0xff]
    %v51 = vld [vmem:[%s1 + $0x20] sm:$0xff]
    %v52 = vld [vmem:[%s1 + $0x28] sm:$0xff]
    %v53 = vld [vmem:[%s1 + $0x30] sm:$0xff]
    %v54 = vld [vmem:[%s1 + $0x38] sm:$0xff]
    %v55 = vld [vmem:[%s1 + $0x40] sm:$0xff]
    %v56 = vld [vmem:[%s1 + $0x48] sm:$0xff]
    %v57 = vld [vmem:[%s1 + $0x50] sm:$0xff]
    %v58 = vld [vmem:[%s1 + $0x58] sm:$0xff]
    %v59 = vld [vmem:[%s1 + $0x60] sm:$0xff]
    %v60 = vld [vmem:[%s1 + $0x68] sm:$0xff]
    %v61 = vld [vmem:[%s1 + $0x70] sm:$0xff]
    %v62 = vld [vmem:[%s1 + $0x78] sm:$0xff]
    %v63 = vld [vmem:[%s1 + $0x80] sm:$0xff]
    %v64 = vld [vmem:[%s1 + $0x88] sm:$0xff]
    %v65 = vld [vmem:[%s1 + $0x90] sm:$0xff]
    %v66 = vld [vmem:[%s1 + $0x98] sm:$0xff]
    %v67 = vld [vmem:[%s1 + $0xa0] sm:$0xff]
    %v68 = vld [vmem:[%s1 + $0xa8] sm:$0xff]
    %v69 = vld [vmem:[%s1 + $0xb0] sm:$0xff]
    %v70 = vld [vmem:[%s1 + $0xb8] sm:$0xff]
    %v71 = vld [vmem:[%s1 + $0xc0] sm:$0xff]
    %v72 = vld [vmem:[%s1 + $0xc8] sm:$0xff]
    %v73 = vld [vmem:[%s1 + $0xd0] sm:$0xff]
    %v74 = vld [vmem:[%s1 + $0xd8] sm:$0xff]
    %v75 = vld [vmem:[%s1 + $0xe0] sm:$0xff]
    %v76 = vld [vmem:[%s1 + $0xe8] sm:$0xff]
    %v77 = vld [vmem:[%s1 + $0xf0] sm:$0xff]
    %v78 = vld [vmem:[%s1 + $0xf8] sm:$0xff]
    %v79 = vld [vmem:[%s1 + $0x100] sm:$0xff]
    %v80 = vld [vmem:[%s1 + $0x108] sm:$0xff]
    %v81 = vld [vmem:[%s1 + $0x110] sm:$0xff]
    %v82 = vld [vmem:[%s1 + $0x118] sm:$0xff]
    %v83 = vld [vmem:[%s1 + $0x120] sm:$0xff]
    %v84 = vld [vmem:[%s1 + $0x128] sm:$0xff]
    %v85 = vld [vmem:[%s1 + $0x130] sm:$0xff]
    %v86 = vld [vmem:[%s1 + $0x138] sm:$0xff]
    %v87 = vld [vmem:[%s1 + $0x140] sm:$0xff]
    %v88 = vld [vmem:[%s1 + $0x148] sm:$0xff]
    %v89 = vld [vmem:[%s1 + $0x150] sm:$0xff]
    %v90 = vld [vmem:[%s1 + $0x158] sm:$0xff]
    %v91 = vld [vmem:[%s1 + $0x160] sm:$0xff]
    %v92 = vld [vmem:[%s1 + $0x168] sm:$0xff]
    %v93 = vld [vmem:[%s1 + $0x170] sm:$0xff]
    %v94 = vld [vmem:[%s1 + $0x178] sm:$0xff]
    %v95 = vld [vmem:[%s1 + $0x180] sm:$0xff]
    %v96 = vld [vmem:[%s1 + $0x188] sm:$0xff]
    %v97 = vld [vmem:[%s1 + $0x190] sm:$0xff]
    %v98 = vld [vmem:[%s1 + $0x198] sm:$0xff]
    %v99 = vld [vmem:[%s1 + $0x1a0] sm:$0xff]
    %v100 = vld [vmem:[%s1 + $0x1a8] sm:$0xff]
    %v101 = vld [vmem:[%s1 + $0x1b0] sm:$0xff]
    %v102 = vld [vmem:[%s1 + $0x1b8] sm:$0xff]
    %v103 = vld [vmem:[%s1 + $0x1c0] sm:$0xff]
    %v104 = vld [vmem:[%s1 + $0x1c8] sm:$0xff]
    %v105 = vld [vmem:[%s1 + $0x1d0] sm:$0xff]
    %v106 = vld [vmem:[%s1 + $0x1d8] sm:$0xff]
    %v107 = vld [vmem:[%s1 + $0x1e0] sm:$0xff]
    %v108 = vld [vmem:[%s1 + $0x1e8] sm:$0xff]
    %v109 = vld [vmem:[%s1 + $0x1f0] sm:$0xff]
    %v110 = vld [vmem:[%s1 + $0x1f8] sm:$0xff]
    %v111 = vld [vmem:[%s2] sm:$0x3]
    %v113 = vlaneseq
    %v114 = vshrl.u32 %v113, 7
    %v115 = vsub.s32 0, %v114
    %v116 = vrot.slane %v111, %v115
    %v117 = vlaneseq
    %v118 = vshrl.u32 %v117, 7
    %v119 = vsub.s32 1, %v118
    %v120 = vrot.slane %v111, %v119
    %123 = vmatprep.subr.mxu0 %v48
    %124 = vmatpush1.msra.mxu0 %v47
    %125 = vmatprep.subr.mxu0 %v50
    %126 = vmatpush1.msra.mxu0 %v49
    %127 = vmatprep.subr.mxu0 %v52
    %128 = vmatpush1.msra.mxu0 %v51
    %129 = vmatprep.subr.mxu0 %v54
    %130 = vmatpush1.msra.mxu0 %v53
    %131 = vmatprep.subr.mxu0 %v56
    %132 = vmatpush1.msra.mxu0 %v55
    %133 = vmatprep.subr.mxu0 %v58
    %134 = vmatpush1.msra.mxu0 %v57
    %135 = vmatprep.subr.mxu0 %v60
    %136 = vmatpush1.msra.mxu0 %v59
    %137 = vmatprep.subr.mxu0 %v62
    %138 = vmatpush1.msra.mxu0 %v61
    %139 = vmatprep.subr.mxu0 %v64
    %140 = vmatpush1.msra.mxu0 %v63
    %141 = vmatprep.subr.mxu0 %v66
    %142 = vmatpush1.msra.mxu0 %v65
    %143 = vmatprep.subr.mxu0 %v68
    %144 = vmatpush1.msra.mxu0 %v67
    %145 = vmatprep.subr.mxu0 %v70
    %146 = vmatpush1.msra.mxu0 %v69
    %147 = vmatprep.subr.mxu0 %v72
    %148 = vmatpush1.msra.mxu0 %v71
    %149 = vmatprep.subr.mxu0 %v74
    %150 = vmatpush1.msra.mxu0 %v73
    %151 = vmatprep.subr.mxu0 %v76
    %152 = vmatpush1.msra.mxu0 %v75
    %153 = vmatprep.subr.mxu0 %v78
    %154 = vmatpush1.msra.mxu0 %v77
    %155 = vmatprep.subr.mxu0 %v80
    %156 = vmatpush1.msra.mxu0 %v79
    %157 = vmatprep.subr.mxu0 %v82
    %158 = vmatpush1.msra.mxu0 %v81
    %159 = vmatprep.subr.mxu0 %v84
    %160 = vmatpush1.msra.mxu0 %v83
    %161 = vmatprep.subr.mxu0 %v86
    %162 = vmatpush1.msra.mxu0 %v85
    %163 = vmatprep.subr.mxu0 %v88
    %164 = vmatpush1.msra.mxu0 %v87
    %165 = vmatprep.subr.mxu0 %v90
    %166 = vmatpush1.msra.mxu0 %v89
    %167 = vmatprep.subr.mxu0 %v92
    %168 = vmatpush1.msra.mxu0 %v91
    %169 = vmatprep.subr.mxu0 %v94
    %170 = vmatpush1.msra.mxu0 %v93
    %171 = vmatprep.subr.mxu0 %v96
    %172 = vmatpush1.msra.mxu0 %v95
    %173 = vmatprep.subr.mxu0 %v98
    %174 = vmatpush1.msra.mxu0 %v97
    %175 = vmatprep.subr.mxu0 %v100
    %176 = vmatpush1.msra.mxu0 %v99
    %177 = vmatprep.subr.mxu0 %v102
    %178 = vmatpush1.msra.mxu0 %v101
    %179 = vmatprep.subr.mxu0 %v104
    %180 = vmatpush1.msra.mxu0 %v103
    %181 = vmatprep.subr.mxu0 %v106
    %182 = vmatpush1.msra.mxu0 %v105
    %183 = vmatprep.subr.mxu0 %v108
    %184 = vmatpush1.msra.mxu0 %v107
    %185 = vmatprep.subr.mxu0 %v110
    %186 = vmatpush1.msra.mxu0 %v109
    %187 = vmatprep.mubr.f32.mxu0 %v16
    %188 = vmatmul.mubr.f32.gmra.mrb[0].mxu0 %v15
    %v189 = vpop.f32.mrb[0].mxu0
    %v190 = vadd.f32 %v116, %v189
    %v191 = vpop.f32.mrb[0].mxu0
    %v192 = vadd.f32 %v120, %v191
    %193 = vmatprep.mubr.f32.mxu0 %v18
    %194 = vmatmul.mubr.f32.gmra.mrb[0].mxu0 %v17
    %v195 = vpop.f32.mrb[0].mxu0
    %v196 = vadd.f32 %v116, %v195
    %v197 = vpop.f32.mrb[0].mxu0
    %v198 = vadd.f32 %v120, %v197
    %199 = vmatprep.mubr.f32.mxu0 %v20
    %200 = vmatmul.mubr.f32.gmra.mrb[0].mxu0 %v19
    %v201 = vpop.f32.mrb[0].mxu0
    %v202 = vadd.f32 %v116, %v201
    %v203 = vpop.f32.mrb[0].mxu0
    %v204 = vadd.f32 %v120, %v203
    %205 = vmatprep.mubr.f32.mxu0 %v22
    %206 = vmatmul.mubr.f32.gmra.mrb[0].mxu0 %v21
    %v207 = vpop.f32.mrb[0].mxu0
    %v208 = vadd.f32 %v116, %v207
    %v209 = vpop.f32.mrb[0].mxu0
    %v210 = vadd.f32 %v120, %v209
    %211 = vmatprep.mubr.f32.mxu0 %v24
    %212 = vmatmul.mubr.f32.gmra.mrb[0].mxu0 %v23
    %v213 = vpop.f32.mrb[0].mxu0
    %v214 = vadd.f32 %v116, %v213
    %v215 = vpop.f32.mrb[0].mxu0
    %v216 = vadd.f32 %v120, %v215
    %217 = vmatprep.mubr.f32.mxu0 %v26
    %218 = vmatmul.mubr.f32.gmra.mrb[0].mxu0 %v25
    %v219 = vpop.f32.mrb[0].mxu0
    %v220 = vadd.f32 %v116, %v219
    %v221 = vpop.f32.mrb[0].mxu0
    %v222 = vadd.f32 %v120, %v221
    %223 = vmatprep.mubr.f32.mxu0 %v28
    %224 = vmatmul.mubr.f32.gmra.mrb[0].mxu0 %v27
    %v225 = vpop.f32.mrb[0].mxu0
    %v226 = vadd.f32 %v116, %v225
    %v227 = vpop.f32.mrb[0].mxu0
    %v228 = vadd.f32 %v120, %v227
    %229 = vmatprep.mubr.f32.mxu0 %v30
    %230 = vmatmul.mubr.f32.gmra.mrb[0].mxu0 %v29
    %v231 = vpop.f32.mrb[0].mxu0
    %v232 = vadd.f32 %v116, %v231
    %v233 = vpop.f32.mrb[0].mxu0
    %v234 = vadd.f32 %v120, %v233
    %235 = vmatprep.mubr.f32.mxu0 %v32
    %236 = vmatmul.mubr.f32.gmra.mrb[0].mxu0 %v31
    %v237 = vpop.f32.mrb[0].mxu0
    %v238 = vadd.f32 %v116, %v237
    %v239 = vpop.f32.mrb[0].mxu0
    %v240 = vadd.f32 %v120, %v239
    %241 = vmatprep.mubr.f32.mxu0 %v34
    %242 = vmatmul.mubr.f32.gmra.mrb[0].mxu0 %v33
    %v243 = vpop.f32.mrb[0].mxu0
    %v244 = vadd.f32 %v116, %v243
    %v245 = vpop.f32.mrb[0].mxu0
    %v246 = vadd.f32 %v120, %v245
    %247 = vmatprep.mubr.f32.mxu0 %v36
    %248 = vmatmul.mubr.f32.gmra.mrb[0].mxu0 %v35
    %v249 = vpop.f32.mrb[0].mxu0
    %v250 = vadd.f32 %v116, %v249
    %v251 = vpop.f32.mrb[0].mxu0
    %v252 = vadd.f32 %v120, %v251
    %253 = vmatprep.mubr.f32.mxu0 %v38
    %254 = vmatmul.mubr.f32.gmra.mrb[0].mxu0 %v37
    %v255 = vpop.f32.mrb[0].mxu0
    %v256 = vadd.f32 %v116, %v255
    %v257 = vpop.f32.mrb[0].mxu0
    %v258 = vadd.f32 %v120, %v257
    %259 = vmatprep.mubr.f32.mxu0 %v40
    %260 = vmatmul.mubr.f32.gmra.mrb[0].mxu0 %v39
    %v261 = vpop.f32.mrb[0].mxu0
    %v262 = vadd.f32 %v116, %v261
    %v263 = vpop.f32.mrb[0].mxu0
    %v264 = vadd.f32 %v120, %v263
    %265 = vmatprep.mubr.f32.mxu0 %v42
    %266 = vmatmul.mubr.f32.gmra.mrb[0].mxu0 %v41
    %v267 = vpop.f32.mrb[0].mxu0
    %v268 = vadd.f32 %v116, %v267
    %v269 = vpop.f32.mrb[0].mxu0
    %v270 = vadd.f32 %v120, %v269
    %271 = vmatprep.mubr.f32.mxu0 %v44
    %272 = vmatmul.mubr.f32.gmra.mrb[0].mxu0 %v43
    %v273 = vpop.f32.mrb[0].mxu0
    %v274 = vadd.f32 %v116, %v273
    %v275 = vpop.f32.mrb[0].mxu0
    %v276 = vadd.f32 %v120, %v275
    %277 = vmatprep.mubr.f32.mxu0 %v46
    %278 = vmatmul.mubr.f32.gmra.mrb[0].mxu0 %v45
    %v279 = vpop.f32.mrb[0].mxu0
    %v280 = vadd.f32 %v116, %v279
    %v281 = vpop.f32.mrb[0].mxu0
    %v282 = vadd.f32 %v120, %v281
    %283 = vdwg.mxu0
    %284 = vst [vmem:[#allocation2] sm:$0xff] %v190
    %285 = vst [vmem:[#allocation2 + $0x8] sm:$0xff] %v192
    %286 = vst [vmem:[#allocation2 + $0x10] sm:$0xff] %v196
    %287 = vst [vmem:[#allocation2 + $0x18] sm:$0xff] %v198
    %288 = vst [vmem:[#allocation2 + $0x20] sm:$0xff] %v202
    %289 = vst [vmem:[#allocation2 + $0x28] sm:$0xff] %v204
    %290 = vst [vmem:[#allocation2 + $0x30] sm:$0xff] %v208
    %291 = vst [vmem:[#allocation2 + $0x38] sm:$0xff] %v210
    %292 = vst [vmem:[#allocation2 + $0x40] sm:$0xff] %v214
    %293 = vst [vmem:[#allocation2 + $0x48] sm:$0xff] %v216
    %294 = vst [vmem:[#allocation2 + $0x50] sm:$0xff] %v220
    %295 = vst [vmem:[#allocation2 + $0x58] sm:$0xff] %v222
    %296 = vst [vmem:[#allocation2 + $0x60] sm:$0xff] %v226
    %297 = vst [vmem:[#allocation2 + $0x68] sm:$0xff] %v228
    %298 = vst [vmem:[#allocation2 + $0x70] sm:$0xff] %v232
    %299 = vst [vmem:[#allocation2 + $0x78] sm:$0xff] %v234
    %300 = vst [vmem:[#allocation2 + $0x80] sm:$0xff] %v238
    %301 = vst [vmem:[#allocation2 + $0x88] sm:$0xff] %v240
    %302 = vst [vmem:[#allocation2 + $0x90] sm:$0xff] %v244
    %303 = vst [vmem:[#allocation2 + $0x98] sm:$0xff] %v246
    %304 = vst [vmem:[#allocation2 + $0xa0] sm:$0xff] %v250
    %305 = vst [vmem:[#allocation2 + $0xa8] sm:$0xff] %v252
    %306 = vst [vmem:[#allocation2 + $0xb0] sm:$0xff] %v256
    %307 = vst [vmem:[#allocation2 + $0xb8] sm:$0xff] %v258
    %308 = vst [vmem:[#allocation2 + $0xc0] sm:$0xff] %v262
    %309 = vst [vmem:[#allocation2 + $0xc8] sm:$0xff] %v264
    %310 = vst [vmem:[#allocation2 + $0xd0] sm:$0xff] %v268
    %311 = vst [vmem:[#allocation2 + $0xd8] sm:$0xff] %v270
    %312 = vst [vmem:[#allocation2 + $0xe0] sm:$0xff] %v274
    %313 = vst [vmem:[#allocation2 + $0xe8] sm:$0xff] %v276
    %314 = vst [vmem:[#allocation2 + $0xf0] sm:$0xff] %v280
    %315 = vst [vmem:[#allocation2 + $0xf8] sm:$0xff] %v282
    // Predicated region
    $region14: #{attention_forward.5} parent=1 // pred_check
      _
    $region15: #{attention_forward.5} parent=1 // pred_check_branch
      %317 = sbr.rel (0) target = $region17
    $region16: #{attention_forward.5} parent=1 // pred_region
      %s319 = ssub.s32 4096, 4096
      %320 = vsyncadd [#allocation3], %s319
      %s321 = sshll.u32 [#allocation2], 4
      %s322 = int_to_ptr.vmem [resolvable:$true] %s321
      %327 = dma.vmem_to_hbm [thread:$0]  %s322, 4096, %s3, [#allocation3], 256, 256, 16
    $region17: #{attention_forward.5} parent=1 // pred_fallthru
      _
    // Predicated region
    $region18: #{attention_forward.5} parent=1 // pred_check
      _
    $region19: #{attention_forward.5} parent=1 // pred_check_branch
      %329 = sbr.rel (0) target = $region21
    $region20: #{attention_forward.5} parent=1 // pred_region
      %330 = dma.done [#allocation3], 4096
    $region21: #{attention_forward.5} parent=1 // pred_fallthru
      _
    %331 = vsyncpa [#allocation3], 1

// kernel: attention_forward.3
$region0: #{attention_forward.3}
  #allocation0 [shape = 'u32[]', space=smem, size = 0x4, offset = 0x4, fixed_abs, tag = 'smem constant byte address 0x4 - core index']
  #allocation1 [shape = 'u32[144,128]{1,0:T(1,128)}', space=vmem, size = 0x12000, scoped, tag = 'internal scratch']
  %s0 = inlined_call_operand.hbm [shape: f32[128,256], index: 0, kind: input, shape index: {}]
  %s1 = inlined_call_operand.hbm [shape: f32[256,768], index: 1, kind: input, shape index: {}]
  %s2 = inlined_call_operand.vmem [shape: f32[128,768], index: 2, kind: output, shape index: {}]
  %s3 = sld [smem:[#allocation0]]
  $region68: #{attention_forward.3} parent=0
    _
  %s5 = ssub.s32 1, %s3
  %s6 = scalar_select 0, %s5, %s3
  $region1: #{attention_forward.3} parent=0
    #allocation2 [shape = 'u8[131072]{0}', space=vmem, size = 0x20000, scoped, tag = 'input window, operand 0, single buffered']
    #allocation3 [shape = 's32[2]{0}', space=sflag, size = 0x8, scoped, tag = 'scoped memory for attention_forward.3']
    #allocation4 [shape = 'u8[524288]{0}', space=vmem, size = 0x80000, scoped, tag = 'input window, operand 1']
    #allocation5 [shape = 's32[2]{0}', space=sflag, size = 0x8, scoped, tag = 'scoped memory for attention_forward.3']
    #allocation6 [shape = 'u8[262144]{0}', space=vmem, size = 0x40000, scoped, tag = 'output window, operand 0']
    %7 = vsyncpa [#allocation3], 0
    %8 = vsyncpa [#allocation5], 0
    %s9 = scalar_lea.sflag [#allocation5], 1
    %10 = vsyncpa %s9, 0
    loop: start=0, step=1, limit=5
    $region2: #{attention_forward.3} parent=1 // loop_pre_header
      _
    $region3: #{attention_forward.3} parent=1 // loop_header
      %s12 = sphi 0, %s16
      %p13 = scmp.ge.s32.totalorder %s12, 5
      %s19 = sphi 0, %s31
      %s20 = sphi 0, %s27
      %s21 = sphi 0, %s19
      %s22 = sphi 0, %s20
      %s23 = sphi 0, %s21
      %s24 = sphi 0, %s22
      %s34 = sphi 0, %s36
      %s37 = sphi 0, %s34
      %s38 = sphi 0, %s37
      %s54 = sphi 0, %s38
      %s60 = sphi 0, %s62
      %s63 = sphi 0, %s60
      %s64 = sphi 0, %s63
      %s80 = sphi 0, %s64
      %s88 = sphi 0, %s90
      %s91 = sphi 0, %s88
      %s92 = sphi 0, %s91
      %s108 = sphi 0, %s92
    $region4: #{attention_forward.3} parent=1 // loop_header_branch
      %15 = sbr.rel (%p13) target = $region8
    $region5: #{attention_forward.3} parent=1 // loop_body
      %s17 = ssub.s32 %s12, 1
      %s18 = ssub.s32 %s12, 2
      %s25 = sadd.s32 1, %s20
      %p26 = scmp.ge.s32.totalorder %s25, 3
      %s27 = scalar_select %p26, 0, %s25
      %s28 = sadd.s32 1, %s19
      %s29 = scalar_select %p26, %s28, %s19
      %p30 = scmp.ge.s32.totalorder %s29, 1
      %s31 = scalar_select %p30, 0, %s29
      %s32 = ssub.s32 %s19, %s31
      %p33 = scmp.eq.s32.totalorder %s32, 0
      %s35 = sadd.s32 %s34, 1
      %s36 = scalar_select %p33, %s34, %s35
      %p39 = pneg %p33
      %p40 = scmp.eq.s32.totalorder %s12, 2
      %p41 = por %p39, %p40
      %p42 = scmp.ne.s32.totalorder %s34, %s37
      %p43 = scmp.eq.s32.totalorder %s12, 0
      %p44 = por %p42, %p43
      %p45 = scmp.ne.s32.totalorder %s34, %s37
      %p46 = scmp.eq.s32.totalorder %s17, 2
      %p47 = por %p45, %p46
      %p48 = scmp.ne.s32.totalorder %s37, %s38
      %p49 = scmp.eq.s32.totalorder %s17, 0
      %p50 = por %p48, %p49
      %p51 = scmp.ne.s32.totalorder %s37, %s38
      %p52 = scmp.eq.s32.totalorder %s18, 2
      %p53 = por %p51, %p52
      %p55 = scmp.ne.s32.totalorder %s38, %s54
      %p56 = scmp.eq.s32.totalorder %s18, 0
      %p57 = por %p55, %p56
      %s58 = ssub.s32 %s20, %s27
      %p59 = scmp.eq.s32.totalorder %s58, 0
      %s61 = sadd.s32 %s60, 1
      %s62 = scalar_select %p59, %s60, %s61
      %p65 = pneg %p59
      %p66 = scmp.eq.s32.totalorder %s12, 2
      %p67 = por %p65, %p66
      %p68 = scmp.ne.s32.totalorder %s60, %s63
      %p69 = scmp.eq.s32.totalorder %s12, 0
      %p70 = por %p68, %p69
      %p71 = scmp.ne.s32.totalorder %s60, %s63
      %p72 = scmp.eq.s32.totalorder %s17, 2
      %p73 = por %p71, %p72
      %p74 = scmp.ne.s32.totalorder %s63, %s64
      %p75 = scmp.eq.s32.totalorder %s17, 0
      %p76 = por %p74, %p75
      %p77 = scmp.ne.s32.totalorder %s63, %s64
      %p78 = scmp.eq.s32.totalorder %s18, 2
      %p79 = por %p77, %p78
      %p81 = scmp.ne.s32.totalorder %s64, %s80
      %p82 = scmp.eq.s32.totalorder %s18, 0
      %p83 = por %p81, %p82
      %s84 = ssub.s32 %s19, %s31
      %s85 = ssub.s32 %s20, %s27
      %s86 = sor.u32 %s84, %s85
      %p87 = scmp.eq.s32.totalorder %s86, 0
      %s89 = sadd.s32 %s88, 1
      %s90 = scalar_select %p87, %s88, %s89
      %p93 = pneg %p87
      %p94 = scmp.eq.s32.totalorder %s12, 2
      %p95 = por %p93, %p94
      %p96 = scmp.ne.s32.totalorder %s88, %s91
      %p97 = scmp.eq.s32.totalorder %s12, 0
      %p98 = por %p96, %p97
      %p99 = scmp.ne.s32.totalorder %s88, %s91
      %p100 = scmp.eq.s32.totalorder %s17, 2
      %p101 = por %p99, %p100
      %p102 = scmp.ne.s32.totalorder %s91, %s92
      %p103 = scmp.eq.s32.totalorder %s17, 0
      %p104 = por %p102, %p103
      %p105 = scmp.ne.s32.totalorder %s91, %s92
      %p106 = scmp.eq.s32.totalorder %s18, 2
      %p107 = por %p105, %p106
      %p109 = scmp.ne.s32.totalorder %s92, %s108
      %p110 = scmp.eq.s32.totalorder %s18, 0
      %p111 = por %p109, %p110
      %p112 = scmp.le.s32.totalorder 1, %s12
      %p113 = scmp.lt.s32.totalorder %s12, 4
      %p114 = pnand %p112, %p113
      %p115 = pneg %p114
      // Predicated region
      $region9: #{attention_forward.3} parent=5 // pred_check
        _
      $region10: #{attention_forward.3} parent=5 // pred_check_branch
        %117 = sbr.rel (%p114) target = $region12
      $region11: #{attention_forward.3} parent=5 // pred_region
        %s118 = ssub.s32 %s12, 1
        // Predicated region
        $region13: #{attention_forward.3} parent=11 // pred_check
          %p119 = pneg %p50
        $region14: #{attention_forward.3} parent=11 // pred_check_branch
          %121 = sbr.rel (%p119) target = $region16
        $region15: #{attention_forward.3} parent=11 // pred_region
          %s122 = smul.u32 16, %s21
          %s124 = ssub.s32 4096, 4096
          %125 = vsyncadd [#allocation3], %s124
          %s126 = smul.addr %s122, 2
          %s127 = smul.addr %s126, 128
          %s128 = scalar_lea.hbm %s0, %s127
          %s129 = sshll.u32 [#allocation2], 4
          %s130 = int_to_ptr.vmem [resolvable:$true] %s129
          %135 = dma.hbm_to_vmem [thread:$0]  %s128, 4096, %s130, [#allocation3], 256, 256, 16
        $region16: #{attention_forward.3} parent=11 // pred_fallthru
          _
      $region12: #{attention_forward.3} parent=5 // pred_fallthru
        _
      %p136 = scmp.lt.s32.totalorder %s12, 3
      // Predicated region
      $region17: #{attention_forward.3} parent=5 // pred_check
        %p137 = pneg %p136
      $region18: #{attention_forward.3} parent=5 // pred_check_branch
        %139 = sbr.rel (%p137) target = $region20
      $region19: #{attention_forward.3} parent=5 // pred_region
        // Predicated region
        $region21: #{attention_forward.3} parent=19 // pred_check
          %p140 = pneg %p70
        $region22: #{attention_forward.3} parent=19 // pred_check_branch
          %142 = sbr.rel (%p140) target = $region24
        $region23: #{attention_forward.3} parent=19 // pred_region
          %s143 = sand.u32 %s60, 1
          %s144 = scalar_lea.sflag [#allocation5], %s143
          %s145 = sand.u32 %s60, 1
          %s146 = smul.addr %s145, 512
          %s147 = scalar_lea.vmem [#allocation4], %s146
          %s148 = smul.u32 2, %s20
          %s150 = ssub.s32 8192, 8192
          %151 = vsyncadd %s144, %s150
          %s152 = smul.addr %s148, 128
          %s153 = scalar_lea.hbm %s1, %s152
          %s154 = sshll.u32 %s147, 4
          %s155 = int_to_ptr.vmem [resolvable:$true] %s154
          %160 = dma.hbm_to_vmem [thread:$0]  %s153, 8192, %s155, %s144, 768, 256, 16
        $region24: #{attention_forward.3} parent=19 // pred_fallthru
          _
      $region20: #{attention_forward.3} parent=5 // pred_fallthru
        _
      %p161 = scmp.le.s32.totalorder 1, %s12
      %p162 = scmp.lt.s32.totalorder %s12, 4
      %p163 = pnand %p161, %p162
      %p164 = pneg %p163
      // Predicated region
      $region25: #{attention_forward.3} parent=5 // pred_check
        _
      $region26: #{attention_forward.3} parent=5 // pred_check_branch
        %166 = sbr.rel (%p163) target = $region28
      $region27: #{attention_forward.3} parent=5 // pred_region
        %s167 = ssub.s32 %s12, 1
        // Predicated region
        $region29: #{attention_forward.3} parent=27 // pred_check
          %p168 = pneg %p50
        $region30: #{attention_forward.3} parent=27 // pred_check_branch
          %170 = sbr.rel (%p168) target = $region32
        $region31: #{attention_forward.3} parent=27 // pred_region
          %171 = dma.done [#allocation3], 4096
        $region32: #{attention_forward.3} parent=27 // pred_fallthru
          _
        %s172 = sand.u32 %s63, 1
        %s173 = scalar_lea.sflag [#allocation5], %s172
        %s174 = sand.u32 %s63, 1
        %s175 = smul.addr %s174, 512
        %s176 = scalar_lea.vmem [#allocation4], %s175
        // Predicated region
        $region33: #{attention_forward.3} parent=27 // pred_check
          %p177 = pneg %p76
        $region34: #{attention_forward.3} parent=27 // pred_check_branch
          %179 = sbr.rel (%p177) target = $region36
        $region35: #{attention_forward.3} parent=27 // pred_region
          %180 = dma.done %s173, 8192
        $region36: #{attention_forward.3} parent=27 // pred_fallthru
          _
        %p181 = pneg %p50
        %p182 = pneg %p47
        %s183 = sand.u32 %s63, 1
        %s184 = scalar_lea.sflag [#allocation5], %s183
        %s185 = sand.u32 %s63, 1
        %s186 = smul.addr %s185, 512
        %s187 = scalar_lea.vmem [#allocation4], %s186
        %p188 = pneg %p76
        %p189 = pneg %p73
        %p190 = pneg %p104
        %p191 = pneg %p101
        %s192 = sand.u32 %s91, 1
        %s193 = sand.u32 %s91, 1
        %s194 = smul.addr %s193, 256
        %s195 = scalar_lea.vmem [#allocation6], %s194
        %s196 = smul.u32 16, %s21
        %s197 = smul.u32 2, %s22
        %s198 = smul.u32 16, %s21
        %s199 = smul.u32 2, %s22
        %v200 = vld [vmem:[#allocation2] sm:$0xff]
        %v201 = vld [vmem:[#allocation2 + $0x8] sm:$0xff]
        %v202 = vld [vmem:[#allocation2 + $0x10] sm:$0xff]
        %v203 = vld [vmem:[#allocation2 + $0x18] sm:$0xff]
        %v204 = vld [vmem:[#allocation2 + $0x20] sm:$0xff]
        %v205 = vld [vmem:[#allocation2 + $0x28] sm:$0xff]
        %v206 = vld [vmem:[#allocation2 + $0x30] sm:$0xff]
        %v207 = vld [vmem:[#allocation2 + $0x38] sm:$0xff]
        %v208 = vld [vmem:[#allocation2 + $0x40] sm:$0xff]
        %v209 = vld [vmem:[#allocation2 + $0x48] sm:$0xff]
        %v210 = vld [vmem:[#allocation2 + $0x50] sm:$0xff]
        %v211 = vld [vmem:[#allocation2 + $0x58] sm:$0xff]
        %v212 = vld [vmem:[#allocation2 + $0x60] sm:$0xff]
        %v213 = vld [vmem:[#allocation2 + $0x68] sm:$0xff]
        %v214 = vld [vmem:[#allocation2 + $0x70] sm:$0xff]
        %v215 = vld [vmem:[#allocation2 + $0x78] sm:$0xff]
        %v216 = vld [vmem:[#allocation2 + $0x80] sm:$0xff]
        %v217 = vld [vmem:[#allocation2 + $0x88] sm:$0xff]
        %v218 = vld [vmem:[#allocation2 + $0x90] sm:$0xff]
        %v219 = vld [vmem:[#allocation2 + $0x98] sm:$0xff]
        %v220 = vld [vmem:[#allocation2 + $0xa0] sm:$0xff]
        %v221 = vld [vmem:[#allocation2 + $0xa8] sm:$0xff]
        %v222 = vld [vmem:[#allocation2 + $0xb0] sm:$0xff]
        %v223 = vld [vmem:[#allocation2 + $0xb8] sm:$0xff]
        %v224 = vld [vmem:[#allocation2 + $0xc0] sm:$0xff]
        %v225 = vld [vmem:[#allocation2 + $0xc8] sm:$0xff]
        %v226 = vld [vmem:[#allocation2 + $0xd0] sm:$0xff]
        %v227 = vld [vmem:[#allocation2 + $0xd8] sm:$0xff]
        %v228 = vld [vmem:[#allocation2 + $0xe0] sm:$0xff]
        %v229 = vld [vmem:[#allocation2 + $0xe8] sm:$0xff]
        %v230 = vld [vmem:[#allocation2 + $0xf0] sm:$0xff]
        %v231 = vld [vmem:[#allocation2 + $0xf8] sm:$0xff]
        %v232 = vld [vmem:[%s176] sm:$0xff]
        %v233 = vld [vmem:[%s176 + $0x8] sm:$0xff]
        %v234 = vld [vmem:[%s176 + $0x10] sm:$0xff]
        %v235 = vld [vmem:[%s176 + $0x18] sm:$0xff]
        %v236 = vld [vmem:[%s176 + $0x20] sm:$0xff]
        %v237 = vld [vmem:[%s176 + $0x28] sm:$0xff]
        %v238 = vld [vmem:[%s176 + $0x30] sm:$0xff]
        %v239 = vld [vmem:[%s176 + $0x38] sm:$0xff]
        %v240 = vld [vmem:[%s176 + $0x40] sm:$0xff]
        %v241 = vld [vmem:[%s176 + $0x48] sm:$0xff]
        %v242 = vld [vmem:[%s176 + $0x50] sm:$0xff]
        %v243 = vld [vmem:[%s176 + $0x58] sm:$0xff]
        %v244 = vld [vmem:[%s176 + $0x60] sm:$0xff]
        %v245 = vld [vmem:[%s176 + $0x68] sm:$0xff]
        %v246 = vld [vmem:[%s176 + $0x70] sm:$0xff]
        %v247 = vld [vmem:[%s176 + $0x78] sm:$0xff]
        %v248 = vld [vmem:[%s176 + $0x80] sm:$0xff]
        %v249 = vld [vmem:[%s176 + $0x88] sm:$0xff]
        %v250 = vld [vmem:[%s176 + $0x90] sm:$0xff]
        %v251 = vld [vmem:[%s176 + $0x98] sm:$0xff]
        %v252 = vld [vmem:[%s176 + $0xa0] sm:$0xff]
        %v253 = vld [vmem:[%s176 + $0xa8] sm:$0xff]
        %v254 = vld [vmem:[%s176 + $0xb0] sm:$0xff]
        %v255 = vld [vmem:[%s176 + $0xb8] sm:$0xff]
        %v256 = vld [vmem:[%s176 + $0xc0] sm:$0xff]
        %v257 = vld [vmem:[%s176 + $0xc8] sm:$0xff]
        %v258 = vld [vmem:[%s176 + $0xd0] sm:$0xff]
        %v259 = vld [vmem:[%s176 + $0xd8] sm:$0xff]
        %v260 = vld [vmem:[%s176 + $0xe0] sm:$0xff]
        %v261 = vld [vmem:[%s176 + $0xe8] sm:$0xff]
        %v262 = vld [vmem:[%s176 + $0xf0] sm:$0xff]
        %v263 = vld [vmem:[%s176 + $0xf8] sm:$0xff]
        %v264 = vld [vmem:[%s176 + $0x100] sm:$0xff]
        %v265 = vld [vmem:[%s176 + $0x108] sm:$0xff]
        %v266 = vld [vmem:[%s176 + $0x110] sm:$0xff]
        %v267 = vld [vmem:[%s176 + $0x118] sm:$0xff]
        %v268 = vld [vmem:[%s176 + $0x120] sm:$0xff]
        %v269 = vld [vmem:[%s176 + $0x128] sm:$0xff]
        %v270 = vld [vmem:[%s176 + $0x130] sm:$0xff]
        %v271 = vld [vmem:[%s176 + $0x138] sm:$0xff]
        %v272 = vld [vmem:[%s176 + $0x140] sm:$0xff]
        %v273 = vld [vmem:[%s176 + $0x148] sm:$0xff]
        %v274 = vld [vmem:[%s176 + $0x150] sm:$0xff]
        %v275 = vld [vmem:[%s176 + $0x158] sm:$0xff]
        %v276 = vld [vmem:[%s176 + $0x160] sm:$0xff]
        %v277 = vld [vmem:[%s176 + $0x168] sm:$0xff]
        %v278 = vld [vmem:[%s176 + $0x170] sm:$0xff]
        %v279 = vld [vmem:[%s176 + $0x178] sm:$0xff]
        %v280 = vld [vmem:[%s176 + $0x180] sm:$0xff]
        %v281 = vld [vmem:[%s176 + $0x188] sm:$0xff]
        %v282 = vld [vmem:[%s176 + $0x190] sm:$0xff]
        %v283 = vld [vmem:[%s176 + $0x198] sm:$0xff]
        %v284 = vld [vmem:[%s176 + $0x1a0] sm:$0xff]
        %v285 = vld [vmem:[%s176 + $0x1a8] sm:$0xff]
        %v286 = vld [vmem:[%s176 + $0x1b0] sm:$0xff]
        %v287 = vld [vmem:[%s176 + $0x1b8] sm:$0xff]
        %v288 = vld [vmem:[%s176 + $0x1c0] sm:$0xff]
        %v289 = vld [vmem:[%s176 + $0x1c8] sm:$0xff]
        %v290 = vld [vmem:[%s176 + $0x1d0] sm:$0xff]
        %v291 = vld [vmem:[%s176 + $0x1d8] sm:$0xff]
        %v292 = vld [vmem:[%s176 + $0x1e0] sm:$0xff]
        %v293 = vld [vmem:[%s176 + $0x1e8] sm:$0xff]
        %v294 = vld [vmem:[%s176 + $0x1f0] sm:$0xff]
        %v295 = vld [vmem:[%s176 + $0x1f8] sm:$0xff]
        %296 = vmatprep.subr.mxu0 %v233
        %297 = vmatpush1.msra.mxu0 %v232
        %298 = vmatprep.subr.mxu0 %v235
        %299 = vmatpush1.msra.mxu0 %v234
        %300 = vmatprep.subr.mxu0 %v237
        %301 = vmatpush1.msra.mxu0 %v236
        %302 = vmatprep.subr.mxu0 %v239
        %303 = vmatpush1.msra.mxu0 %v238
        %304 = vmatprep.subr.mxu0 %v241
        %305 = vmatpush1.msra.mxu0 %v240
        %306 = vmatprep.subr.mxu0 %v243
        %307 = vmatpush1.msra.mxu0 %v242
        %308 = vmatprep.subr.mxu0 %v245
        %309 = vmatpush1.msra.mxu0 %v244
        %310 = vmatprep.subr.mxu0 %v247
        %311 = vmatpush1.msra.mxu0 %v246
        %312 = vmatprep.subr.mxu0 %v249
        %313 = vmatpush1.msra.mxu0 %v248
        %314 = vmatprep.subr.mxu0 %v251
        %315 = vmatpush1.msra.mxu0 %v250
        %316 = vmatprep.subr.mxu0 %v253
        %317 = vmatpush1.msra.mxu0 %v252
        %318 = vmatprep.subr.mxu0 %v255
        %319 = vmatpush1.msra.mxu0 %v254
        %320 = vmatprep.subr.mxu0 %v257
        %321 = vmatpush1.msra.mxu0 %v256
        %322 = vmatprep.subr.mxu0 %v259
        %323 = vmatpush1.msra.mxu0 %v258
        %324 = vmatprep.subr.mxu0 %v261
        %325 = vmatpush1.msra.mxu0 %v260
        %326 = vmatprep.subr.mxu0 %v263
        %327 = vmatpush1.msra.mxu0 %v262
        %328 = vmatprep.subr.mxu0 %v265
        %329 = vmatpush1.msra.mxu0 %v264
        %330 = vmatprep.subr.mxu0 %v267
        %331 = vmatpush1.msra.mxu0 %v266
        %332 = vmatprep.subr.mxu0 %v269
        %333 = vmatpush1.msra.mxu0 %v268
        %334 = vmatprep.subr.mxu0 %v271
        %335 = vmatpush1.msra.mxu0 %v270
        %336 = vmatprep.subr.mxu0 %v273
        %337 = vmatpush1.msra.mxu0 %v272
        %338 = vmatprep.subr.mxu0 %v275
        %339 = vmatpush1.msra.mxu0 %v274
        %340 = vmatprep.subr.mxu0 %v277
        %341 = vmatpush1.msra.mxu0 %v276
        %342 = vmatprep.subr.mxu0 %v279
        %343 = vmatpush1.msra.mxu0 %v278
        %344 = vmatprep.subr.mxu0 %v281
        %345 = vmatpush1.msra.mxu0 %v280
        %346 = vmatprep.subr.mxu0 %v283
        %347 = vmatpush1.msra.mxu0 %v282
        %348 = vmatprep.subr.mxu0 %v285
        %349 = vmatpush1.msra.mxu0 %v284
        %350 = vmatprep.subr.mxu0 %v287
        %351 = vmatpush1.msra.mxu0 %v286
        %352 = vmatprep.subr.mxu0 %v289
        %353 = vmatpush1.msra.mxu0 %v288
        %354 = vmatprep.subr.mxu0 %v291
        %355 = vmatpush1.msra.mxu0 %v290
        %356 = vmatprep.subr.mxu0 %v293
        %357 = vmatpush1.msra.mxu0 %v292
        %358 = vmatprep.subr.mxu0 %v295
        %359 = vmatpush1.msra.mxu0 %v294
        %360 = vmatprep.mubr.f32.mxu0 %v201
        %361 = vmatmul.mubr.f32.gmra.mrb[0].mxu0 %v200
        %v362 = vpop.f32.mrb[0].mxu0
        %v363 = vadd.f32 0.0, %v362
        %v364 = vpop.f32.mrb[0].mxu0
        %v365 = vadd.f32 0.0, %v364
        %366 = vmatprep.mubr.f32.mxu0 %v203
        %367 = vmatmul.mubr.f32.gmra.mrb[0].mxu0 %v202
        %v368 = vpop.f32.mrb[0].mxu0
        %v369 = vadd.f32 0.0, %v368
        %v370 = vpop.f32.mrb[0].mxu0
        %v371 = vadd.f32 0.0, %v370
        %372 = vmatprep.mubr.f32.mxu0 %v205
        %373 = vmatmul.mubr.f32.gmra.mrb[0].mxu0 %v204
        %v374 = vpop.f32.mrb[0].mxu0
        %v375 = vadd.f32 0.0, %v374
        %v376 = vpop.f32.mrb[0].mxu0
        %v377 = vadd.f32 0.0, %v376
        %378 = vmatprep.mubr.f32.mxu0 %v207
        %379 = vmatmul.mubr.f32.gmra.mrb[0].mxu0 %v206
        %v380 = vpop.f32.mrb[0].mxu0
        %v381 = vadd.f32 0.0, %v380
        %v382 = vpop.f32.mrb[0].mxu0
        %v383 = vadd.f32 0.0, %v382
        %384 = vmatprep.mubr.f32.mxu0 %v209
        %385 = vmatmul.mubr.f32.gmra.mrb[0].mxu0 %v208
        %v386 = vpop.f32.mrb[0].mxu0
        %v387 = vadd.f32 0.0, %v386
        %v388 = vpop.f32.mrb[0].mxu0
        %v389 = vadd.f32 0.0, %v388
        %390 = vmatprep.mubr.f32.mxu0 %v211
        %391 = vmatmul.mubr.f32.gmra.mrb[0].mxu0 %v210
        %v392 = vpop.f32.mrb[0].mxu0
        %v393 = vadd.f32 0.0, %v392
        %v394 = vpop.f32.mrb[0].mxu0
        %v395 = vadd.f32 0.0, %v394
        %396 = vmatprep.mubr.f32.mxu0 %v213
        %397 = vmatmul.mubr.f32.gmra.mrb[0].mxu0 %v212
        %v398 = vpop.f32.mrb[0].mxu0
        %v399 = vadd.f32 0.0, %v398
        %v400 = vpop.f32.mrb[0].mxu0
        %v401 = vadd.f32 0.0, %v400
        %402 = vmatprep.mubr.f32.mxu0 %v215
        %403 = vmatmul.mubr.f32.gmra.mrb[0].mxu0 %v214
        %v404 = vpop.f32.mrb[0].mxu0
        %v405 = vadd.f32 0.0, %v404
        %v406 = vpop.f32.mrb[0].mxu0
        %v407 = vadd.f32 0.0, %v406
        %408 = vmatprep.mubr.f32.mxu0 %v217
        %409 = vmatmul.mubr.f32.gmra.mrb[0].mxu0 %v216
        %v410 = vpop.f32.mrb[0].mxu0
        %v411 = vadd.f32 0.0, %v410
        %v412 = vpop.f32.mrb[0].mxu0
        %v413 = vadd.f32 0.0, %v412
        %414 = vmatprep.mubr.f32.mxu0 %v219
        %415 = vmatmul.mubr.f32.gmra.mrb[0].mxu0 %v218
        %v416 = vpop.f32.mrb[0].mxu0
        %v417 = vadd.f32 0.0, %v416
        %v418 = vpop.f32.mrb[0].mxu0
        %v419 = vadd.f32 0.0, %v418
        %420 = vmatprep.mubr.f32.mxu0 %v221
        %421 = vmatmul.mubr.f32.gmra.mrb[0].mxu0 %v220
        %v422 = vpop.f32.mrb[0].mxu0
        %v423 = vadd.f32 0.0, %v422
        %v424 = vpop.f32.mrb[0].mxu0
        %v425 = vadd.f32 0.0, %v424
        %426 = vmatprep.mubr.f32.mxu0 %v223
        %427 = vmatmul.mubr.f32.gmra.mrb[0].mxu0 %v222
        %v428 = vpop.f32.mrb[0].mxu0
        %v429 = vadd.f32 0.0, %v428
        %v430 = vpop.f32.mrb[0].mxu0
        %v431 = vadd.f32 0.0, %v430
        %432 = vmatprep.mubr.f32.mxu0 %v225
        %433 = vmatmul.mubr.f32.gmra.mrb[0].mxu0 %v224
        %v434 = vpop.f32.mrb[0].mxu0
        %v435 = vadd.f32 0.0, %v434
        %v436 = vpop.f32.mrb[0].mxu0
        %v437 = vadd.f32 0.0, %v436
        %438 = vmatprep.mubr.f32.mxu0 %v227
        %439 = vmatmul.mubr.f32.gmra.mrb[0].mxu0 %v226
        %v440 = vpop.f32.mrb[0].mxu0
        %v441 = vadd.f32 0.0, %v440
        %v442 = vpop.f32.mrb[0].mxu0
        %v443 = vadd.f32 0.0, %v442
        %444 = vmatprep.mubr.f32.mxu0 %v229
        %445 = vmatmul.mubr.f32.gmra.mrb[0].mxu0 %v228
        %v446 = vpop.f32.mrb[0].mxu0
        %v447 = vadd.f32 0.0, %v446
        %v448 = vpop.f32.mrb[0].mxu0
        %v449 = vadd.f32 0.0, %v448
        %450 = vmatprep.mubr.f32.mxu0 %v231
        %451 = vmatmul.mubr.f32.gmra.mrb[0].mxu0 %v230
        %v452 = vpop.f32.mrb[0].mxu0
        %v453 = vadd.f32 0.0, %v452
        %v454 = vpop.f32.mrb[0].mxu0
        %v455 = vadd.f32 0.0, %v454
        %456 = vdwg.mxu0
        %457 = vst [vmem:[%s195] sm:$0xff] %v363
        %458 = vst [vmem:[%s195 + $0x8] sm:$0xff] %v365
        %459 = vst [vmem:[%s195 + $0x10] sm:$0xff] %v369
        %460 = vst [vmem:[%s195 + $0x18] sm:$0xff] %v371
        %461 = vst [vmem:[%s195 + $0x20] sm:$0xff] %v375
        %462 = vst [vmem:[%s195 + $0x28] sm:$0xff] %v377
        %463 = vst [vmem:[%s195 + $0x30] sm:$0xff] %v381
        %464 = vst [vmem:[%s195 + $0x38] sm:$0xff] %v383
        %465 = vst [vmem:[%s195 + $0x40] sm:$0xff] %v387
        %466 = vst [vmem:[%s195 + $0x48] sm:$0xff] %v389
        %467 = vst [vmem:[%s195 + $0x50] sm:$0xff] %v393
        %468 = vst [vmem:[%s195 + $0x58] sm:$0xff] %v395
        %469 = vst [vmem:[%s195 + $0x60] sm:$0xff] %v399
        %470 = vst [vmem:[%s195 + $0x68] sm:$0xff] %v401
        %471 = vst [vmem:[%s195 + $0x70] sm:$0xff] %v405
        %472 = vst [vmem:[%s195 + $0x78] sm:$0xff] %v407
        %473 = vst [vmem:[%s195 + $0x80] sm:$0xff] %v411
        %474 = vst [vmem:[%s195 + $0x88] sm:$0xff] %v413
        %475 = vst [vmem:[%s195 + $0x90] sm:$0xff] %v417
        %476 = vst [vmem:[%s195 + $0x98] sm:$0xff] %v419
        %477 = vst [vmem:[%s195 + $0xa0] sm:$0xff] %v423
        %478 = vst [vmem:[%s195 + $0xa8] sm:$0xff] %v425
        %479 = vst [vmem:[%s195 + $0xb0] sm:$0xff] %v429
        %480 = vst [vmem:[%s195 + $0xb8] sm:$0xff] %v431
        %481 = vst [vmem:[%s195 + $0xc0] sm:$0xff] %v435
        %482 = vst [vmem:[%s195 + $0xc8] sm:$0xff] %v437
        %483 = vst [vmem:[%s195 + $0xd0] sm:$0xff] %v441
        %484 = vst [vmem:[%s195 + $0xd8] sm:$0xff] %v443
        %485 = vst [vmem:[%s195 + $0xe0] sm:$0xff] %v447
        %486 = vst [vmem:[%s195 + $0xe8] sm:$0xff] %v449
        %487 = vst [vmem:[%s195 + $0xf0] sm:$0xff] %v453
        %488 = vst [vmem:[%s195 + $0xf8] sm:$0xff] %v455
        %s489 = sand.u32 %s91, 1
        %s490 = sand.u32 %s91, 1
        %s491 = smul.addr %s490, 256
        %s492 = scalar_lea.vmem [#allocation6], %s491
        // Predicated region
        $region37: #{attention_forward.3} parent=27 // pred_check
          %p493 = pneg %p101
        $region38: #{attention_forward.3} parent=27 // pred_check_branch
          %495 = sbr.rel (%p493) target = $region40
        $region39: #{attention_forward.3} parent=27 // pred_region
          %s496 = smul.u32 16, %s21
          %s497 = smul.u32 2, %s22
          %s498 = smul.addr %s496, 6
          %s499 = sadd.s32 %s497, %s498
          %s500 = smul.addr %s499, 8
          %s501 = scalar_lea.vmem %s2, %s500
          // Predicated region
          $region41: #{attention_forward.3} parent=39 // pred_check
            _
          $region42: #{attention_forward.3} parent=39 // pred_check_branch
            %503 = sbr.rel (0) target = $region44
          $region43: #{attention_forward.3} parent=39 // pred_region
            // Predicated region
            $region45: #{attention_forward.3} parent=43 // pred_check
              _
            $region46: #{attention_forward.3} parent=43 // pred_check_branch
              %505 = sbr.rel (0) target = $region48
            $region47: #{attention_forward.3} parent=43 // pred_region
              loop: start=0, step=1, limit=1
              $region49: #{attention_forward.3} parent=47 // loop_pre_header
                _
              $region50: #{attention_forward.3} parent=47 // loop_header
                %s507 = sphi 0, %s511
                %p508 = scmp.ge.s32.totalorder %s507, 1
                %s512 = sphi %s492, %s492
                %s513 = sphi %s501, %s501
              $region51: #{attention_forward.3} parent=47 // loop_header_branch
                %510 = sbr.rel (%p508) target = $region55
              $region52: #{attention_forward.3} parent=47 // loop_body
                %v514 = vld [vmem:[%s512] sm:$0xff]
                %515 = vst [vmem:[%s513] sm:$0xff] %v514
                %v516 = vld [vmem:[%s512 + $0x8] sm:$0xff]
                %517 = vst [vmem:[%s513 + $0x8] sm:$0xff] %v516
                %v518 = vld [vmem:[%s512 + $0x10] sm:$0xff]
                %519 = vst [vmem:[%s513 + $0x30] sm:$0xff] %v518
                %v520 = vld [vmem:[%s512 + $0x18] sm:$0xff]
                %521 = vst [vmem:[%s513 + $0x38] sm:$0xff] %v520
                %v522 = vld [vmem:[%s512 + $0x20] sm:$0xff]
                %523 = vst [vmem:[%s513 + $0x60] sm:$0xff] %v522
                %v524 = vld [vmem:[%s512 + $0x28] sm:$0xff]
                %525 = vst [vmem:[%s513 + $0x68] sm:$0xff] %v524
                %v526 = vld [vmem:[%s512 + $0x30] sm:$0xff]
                %527 = vst [vmem:[%s513 + $0x90] sm:$0xff] %v526
                %v528 = vld [vmem:[%s512 + $0x38] sm:$0xff]
                %529 = vst [vmem:[%s513 + $0x98] sm:$0xff] %v528
                %v530 = vld [vmem:[%s512 + $0x40] sm:$0xff]
                %531 = vst [vmem:[%s513 + $0xc0] sm:$0xff] %v530
                %v532 = vld [vmem:[%s512 + $0x48] sm:$0xff]
                %533 = vst [vmem:[%s513 + $0xc8] sm:$0xff] %v532
                %v534 = vld [vmem:[%s512 + $0x50] sm:$0xff]
                %535 = vst [vmem:[%s513 + $0xf0] sm:$0xff] %v534
                %v536 = vld [vmem:[%s512 + $0x58] sm:$0xff]
                %537 = vst [vmem:[%s513 + $0xf8] sm:$0xff] %v536
                %v538 = vld [vmem:[%s512 + $0x60] sm:$0xff]
                %539 = vst [vmem:[%s513 + $0x120] sm:$0xff] %v538
                %v540 = vld [vmem:[%s512 + $0x68] sm:$0xff]
                %541 = vst [vmem:[%s513 + $0x128] sm:$0xff] %v540
                %v542 = vld [vmem:[%s512 + $0x70] sm:$0xff]
                %543 = vst [vmem:[%s513 + $0x150] sm:$0xff] %v542
                %v544 = vld [vmem:[%s512 + $0x78] sm:$0xff]
                %545 = vst [vmem:[%s513 + $0x158] sm:$0xff] %v544
                %v546 = vld [vmem:[%s512 + $0x80] sm:$0xff]
                %547 = vst [vmem:[%s513 + $0x180] sm:$0xff] %v546
                %v548 = vld [vmem:[%s512 + $0x88] sm:$0xff]
                %549 = vst [vmem:[%s513 + $0x188] sm:$0xff] %v548
                %v550 = vld [vmem:[%s512 + $0x90] sm:$0xff]
                %551 = vst [vmem:[%s513 + $0x1b0] sm:$0xff] %v550
                %v552 = vld [vmem:[%s512 + $0x98] sm:$0xff]
                %553 = vst [vmem:[%s513 + $0x1b8] sm:$0xff] %v552
                %v554 = vld [vmem:[%s512 + $0xa0] sm:$0xff]
                %555 = vst [vmem:[%s513 + $0x1e0] sm:$0xff] %v554
                %v556 = vld [vmem:[%s512 + $0xa8] sm:$0xff]
                %557 = vst [vmem:[%s513 + $0x1e8] sm:$0xff] %v556
                %v558 = vld [vmem:[%s512 + $0xb0] sm:$0xff]
                %559 = vst [vmem:[%s513 + $0x210] sm:$0xff] %v558
                %v560 = vld [vmem:[%s512 + $0xb8] sm:$0xff]
                %561 = vst [vmem:[%s513 + $0x218] sm:$0xff] %v560
                %v562 = vld [vmem:[%s512 + $0xc0] sm:$0xff]
                %563 = vst [vmem:[%s513 + $0x240] sm:$0xff] %v562
                %v564 = vld [vmem:[%s512 + $0xc8] sm:$0xff]
                %565 = vst [vmem:[%s513 + $0x248] sm:$0xff] %v564
                %v566 = vld [vmem:[%s512 + $0xd0] sm:$0xff]
                %567 = vst [vmem:[%s513 + $0x270] sm:$0xff] %v566
                %v568 = vld [vmem:[%s512 + $0xd8] sm:$0xff]
                %569 = vst [vmem:[%s513 + $0x278] sm:$0xff] %v568
                %v570 = vld [vmem:[%s512 + $0xe0] sm:$0xff]
                %571 = vst [vmem:[%s513 + $0x2a0] sm:$0xff] %v570
                %v572 = vld [vmem:[%s512 + $0xe8] sm:$0xff]
                %573 = vst [vmem:[%s513 + $0x2a8] sm:$0xff] %v572
                %v574 = vld [vmem:[%s512 + $0xf0] sm:$0xff]
                %575 = vst [vmem:[%s513 + $0x2d0] sm:$0xff] %v574
                %v576 = vld [vmem:[%s512 + $0xf8] sm:$0xff]
                %577 = vst [vmem:[%s513 + $0x2d8] sm:$0xff] %v576
              $region53: #{attention_forward.3} parent=47 // loop_footer
                %s511 = sadd.s32 1, %s507
              $region54: #{attention_forward.3} parent=47 // loop_footer_branch
                %506 = sbr.rel target = $region50
              $region55: #{attention_forward.3} parent=47 // loop_exit
                _
            $region48: #{attention_forward.3} parent=43 // pred_fallthru
              _
            // Predicated region
            $region56: #{attention_forward.3} parent=43 // pred_check
              _
            $region57: #{attention_forward.3} parent=43 // pred_check_branch
              %579 = sbr.rel target = $region59
            $region58: #{attention_forward.3} parent=43 // pred_region
              _
            $region59: #{attention_forward.3} parent=43 // pred_fallthru
              _
          $region44: #{attention_forward.3} parent=39 // pred_fallthru
            _
          %580 = vnop
        $region40: #{attention_forward.3} parent=27 // pred_fallthru
          _
      $region28: #{attention_forward.3} parent=5 // pred_fallthru
        _
      %p581 = scmp.le.s32.totalorder 2, %s12
      // Predicated region
      $region60: #{attention_forward.3} parent=5 // pred_check
        %p582 = pneg %p581
      $region61: #{attention_forward.3} parent=5 // pred_check_branch
        %584 = sbr.rel (%p582) target = $region63
      $region62: #{attention_forward.3} parent=5 // pred_region
        %s585 = ssub.s32 %s12, 2
        // Predicated region
        $region64: #{attention_forward.3} parent=62 // pred_check
          %p586 = pneg %p107
        $region65: #{attention_forward.3} parent=62 // pred_check_branch
          %588 = sbr.rel (%p586) target = $region67
        $region66: #{attention_forward.3} parent=62 // pred_region
          %s589 = sand.u32 %s92, 1
          %s590 = sand.u32 %s92, 1
          %s591 = smul.addr %s590, 256
          %s592 = scalar_lea.vmem [#allocation6], %s591
        $region67: #{attention_forward.3} parent=62 // pred_fallthru
          _
      $region63: #{attention_forward.3} parent=5 // pred_fallthru
        _
    $region6: #{attention_forward.3} parent=1 // loop_footer
      %s16 = sadd.s32 1, %s12
    $region7: #{attention_forward.3} parent=1 // loop_footer_branch
      %11 = sbr.rel target = $region3
    $region8: #{attention_forward.3} parent=1 // loop_exit
      _
    %593 = vsyncpa [#allocation3], 1
    %s594 = scalar_lea.sflag [#allocation3], 1
    %595 = vsyncpa %s594, 1
    %596 = vsyncpa [#allocation5], 1
    %s597 = scalar_lea.sflag [#allocation5], 1
    %598 = vsyncpa %s597, 1

// kernel: attention_forward.4
$region0: #{attention_forward.4}
  #allocation0 [shape = 'u32[]', space=smem, size = 0x4, offset = 0x4, fixed_abs, tag = 'smem constant byte address 0x4 - core index']
  #allocation1 [shape = 'u32[144,128]{1,0:T(1,128)}', space=vmem, size = 0x12000, scoped, tag = 'internal scratch']
  %s0 = inlined_call_operand.vmem [shape: f32[2,64,768], index: 0, kind: input, shape index: {}, may-alias: {0,1,2}]
  %s1 = inlined_call_operand.vmem [shape: f32[2,64,768], index: 1, kind: input, shape index: {}, may-alias: {0,1,2}]
  %s2 = inlined_call_operand.vmem [shape: f32[2,64,768], index: 2, kind: input, shape index: {}, may-alias: {0,1,2}]
  %s3 = inlined_call_operand.vmem [shape: f32[2,64,64], index: 3, kind: input, shape index: {}]
  %s4 = inlined_call_operand.vmem [shape: f32[2,64,256], index: 4, kind: output, shape index: {}]
  %s5 = sld [smem:[#allocation0]]
  $region197: #{attention_forward.4} parent=0
    _
  %s7 = ssub.s32 1, %s5
  %s8 = scalar_select 0, %s7, %s5
  $region1: #{attention_forward.4} parent=0
    #allocation2 [shape = 'u8[32768]{0}', space=vmem, size = 0x8000, scoped, tag = 'input window, operand 0']
    #allocation3 [shape = 'u8[65536]{0}', space=vmem, size = 0x10000, scoped, tag = 'input window, operand 1']
    #allocation4 [shape = 'u8[65536]{0}', space=vmem, size = 0x10000, scoped, tag = 'input window, operand 2']
    #allocation5 [shape = 'u8[32768]{0}', space=vmem, size = 0x8000, scoped, tag = 'output window, operand 0']
    loop: start=0, step=1, limit=10
    $region2: #{attention_forward.4} parent=1 // loop_pre_header
      _
    $region3: #{attention_forward.4} parent=1 // loop_header
      %s10 = sphi 0, %s14
      %p11 = scmp.ge.s32.totalorder %s10, 10
      %s17 = sphi 0, %s36
      %s18 = sphi 0, %s32
      %s19 = sphi 0, %s28
      %s20 = sphi 0, %s17
      %s21 = sphi 0, %s18
      %s22 = sphi 0, %s19
      %s23 = sphi 0, %s20
      %s24 = sphi 0, %s21
      %s25 = sphi 0, %s22
      %s43 = sphi 0, %s45
      %s46 = sphi 0, %s43
      %s47 = sphi 0, %s46
      %s63 = sphi 0, %s47
      %s73 = sphi 0, %s75
      %s76 = sphi 0, %s73
      %s77 = sphi 0, %s76
      %s93 = sphi 0, %s77
      %s103 = sphi 0, %s105
      %s106 = sphi 0, %s103
      %s107 = sphi 0, %s106
      %s123 = sphi 0, %s107
      %s131 = sphi 0, %s133
      %s134 = sphi 0, %s131
      %s135 = sphi 0, %s134
      %s151 = sphi 0, %s135
      %s161 = sphi 0, %s163
      %s164 = sphi 0, %s161
      %s165 = sphi 0, %s164
      %s181 = sphi 0, %s165
    $region4: #{attention_forward.4} parent=1 // loop_header_branch
      %13 = sbr.rel (%p11) target = $region8
    $region5: #{attention_forward.4} parent=1 // loop_body
      %s15 = ssub.s32 %s10, 1
      %s16 = ssub.s32 %s10, 2
      %s26 = sadd.s32 1, %s19
      %p27 = scmp.ge.s32.totalorder %s26, 2
      %s28 = scalar_select %p27, 0, %s26
      %s29 = sadd.s32 1, %s18
      %s30 = scalar_select %p27, %s29, %s18
      %p31 = scmp.ge.s32.totalorder %s30, 2
      %s32 = scalar_select %p31, 0, %s30
      %s33 = sadd.s32 1, %s17
      %s34 = scalar_select %p31, %s33, %s17
      %p35 = scmp.ge.s32.totalorder %s34, 2
      %s36 = scalar_select %p35, 0, %s34
      %s37 = ssub.s32 %s17, %s36
      %s38 = ssub.s32 %s19, %s28
      %s39 = sor.u32 %s37, %s38
      %s40 = ssub.s32 %s18, %s32
      %s41 = sor.u32 %s39, %s40
      %p42 = scmp.eq.s32.totalorder %s41, 0
      %s44 = sadd.s32 %s43, 1
      %s45 = scalar_select %p42, %s43, %s44
      %p48 = pneg %p42
      %p49 = scmp.eq.s32.totalorder %s10, 7
      %p50 = por %p48, %p49
      %p51 = scmp.ne.s32.totalorder %s43, %s46
      %p52 = scmp.eq.s32.totalorder %s10, 0
      %p53 = por %p51, %p52
      %p54 = scmp.ne.s32.totalorder %s43, %s46
      %p55 = scmp.eq.s32.totalorder %s15, 7
      %p56 = por %p54, %p55
      %p57 = scmp.ne.s32.totalorder %s46, %s47
      %p58 = scmp.eq.s32.totalorder %s15, 0
      %p59 = por %p57, %p58
      %p60 = scmp.ne.s32.totalorder %s46, %s47
      %p61 = scmp.eq.s32.totalorder %s16, 7
      %p62 = por %p60, %p61
      %p64 = scmp.ne.s32.totalorder %s47, %s63
      %p65 = scmp.eq.s32.totalorder %s16, 0
      %p66 = por %p64, %p65
      %s67 = sadd.s32 %s18, 2
      %s68 = sadd.s32 %s32, 2
      %s69 = ssub.s32 %s17, %s36
      %s70 = ssub.s32 %s67, %s68
      %s71 = sor.u32 %s69, %s70
      %p72 = scmp.eq.s32.totalorder %s71, 0
      %s74 = sadd.s32 %s73, 1
      %s75 = scalar_select %p72, %s73, %s74
      %p78 = pneg %p72
      %p79 = scmp.eq.s32.totalorder %s10, 7
      %p80 = por %p78, %p79
      %p81 = scmp.ne.s32.totalorder %s73, %s76
      %p82 = scmp.eq.s32.totalorder %s10, 0
      %p83 = por %p81, %p82
      %p84 = scmp.ne.s32.totalorder %s73, %s76
      %p85 = scmp.eq.s32.totalorder %s15, 7
      %p86 = por %p84, %p85
      %p87 = scmp.ne.s32.totalorder %s76, %s77
      %p88 = scmp.eq.s32.totalorder %s15, 0
      %p89 = por %p87, %p88
      %p90 = scmp.ne.s32.totalorder %s76, %s77
      %p91 = scmp.eq.s32.totalorder %s16, 7
      %p92 = por %p90, %p91
      %p94 = scmp.ne.s32.totalorder %s77, %s93
      %p95 = scmp.eq.s32.totalorder %s16, 0
      %p96 = por %p94, %p95
      %s97 = sadd.s32 %s18, 4
      %s98 = sadd.s32 %s32, 4
      %s99 = ssub.s32 %s17, %s36
      %s100 = ssub.s32 %s97, %s98
      %s101 = sor.u32 %s99, %s100
      %p102 = scmp.eq.s32.totalorder %s101, 0
      %s104 = sadd.s32 %s103, 1
      %s105 = scalar_select %p102, %s103, %s104
      %p108 = pneg %p102
      %p109 = scmp.eq.s32.totalorder %s10, 7
      %p110 = por %p108, %p109
      %p111 = scmp.ne.s32.totalorder %s103, %s106
      %p112 = scmp.eq.s32.totalorder %s10, 0
      %p113 = por %p111, %p112
      %p114 = scmp.ne.s32.totalorder %s103, %s106
      %p115 = scmp.eq.s32.totalorder %s15, 7
      %p116 = por %p114, %p115
      %p117 = scmp.ne.s32.totalorder %s106, %s107
      %p118 = scmp.eq.s32.totalorder %s15, 0
      %p119 = por %p117, %p118
      %p120 = scmp.ne.s32.totalorder %s106, %s107
      %p121 = scmp.eq.s32.totalorder %s16, 7
      %p122 = por %p120, %p121
      %p124 = scmp.ne.s32.totalorder %s107, %s123
      %p125 = scmp.eq.s32.totalorder %s16, 0
      %p126 = por %p124, %p125
      %s127 = ssub.s32 %s18, %s32
      %s128 = ssub.s32 %s19, %s28
      %s129 = sor.u32 %s127, %s128
      %p130 = scmp.eq.s32.totalorder %s129, 0
      %s132 = sadd.s32 %s131, 1
      %s133 = scalar_select %p130, %s131, %s132
      %p136 = pneg %p130
      %p137 = scmp.eq.s32.totalorder %s10, 7
      %p138 = por %p136, %p137
      %p139 = scmp.ne.s32.totalorder %s131, %s134
      %p140 = scmp.eq.s32.totalorder %s10, 0
      %p141 = por %p139, %p140
      %p142 = scmp.ne.s32.totalorder %s131, %s134
      %p143 = scmp.eq.s32.totalorder %s15, 7
      %p144 = por %p142, %p143
      %p145 = scmp.ne.s32.totalorder %s134, %s135
      %p146 = scmp.eq.s32.totalorder %s15, 0
      %p147 = por %p145, %p146
      %p148 = scmp.ne.s32.totalorder %s134, %s135
      %p149 = scmp.eq.s32.totalorder %s16, 7
      %p150 = por %p148, %p149
      %p152 = scmp.ne.s32.totalorder %s135, %s151
      %p153 = scmp.eq.s32.totalorder %s16, 0
      %p154 = por %p152, %p153
      %s155 = ssub.s32 %s17, %s36
      %s156 = ssub.s32 %s19, %s28
      %s157 = sor.u32 %s155, %s156
      %s158 = ssub.s32 %s18, %s32
      %s159 = sor.u32 %s157, %s158
      %p160 = scmp.eq.s32.totalorder %s159, 0
      %s162 = sadd.s32 %s161, 1
      %s163 = scalar_select %p160, %s161, %s162
      %p166 = pneg %p160
      %p167 = scmp.eq.s32.totalorder %s10, 7
      %p168 = por %p166, %p167
      %p169 = scmp.ne.s32.totalorder %s161, %s164
      %p170 = scmp.eq.s32.totalorder %s10, 0
      %p171 = por %p169, %p170
      %p172 = scmp.ne.s32.totalorder %s161, %s164
      %p173 = scmp.eq.s32.totalorder %s15, 7
      %p174 = por %p172, %p173
      %p175 = scmp.ne.s32.totalorder %s164, %s165
      %p176 = scmp.eq.s32.totalorder %s15, 0
      %p177 = por %p175, %p176
      %p178 = scmp.ne.s32.totalorder %s164, %s165
      %p179 = scmp.eq.s32.totalorder %s16, 7
      %p180 = por %p178, %p179
      %p182 = scmp.ne.s32.totalorder %s165, %s181
      %p183 = scmp.eq.s32.totalorder %s16, 0
      %p184 = por %p182, %p183
      %p185 = scmp.le.s32.totalorder 1, %s10
      %p186 = scmp.lt.s32.totalorder %s10, 9
      %p187 = pnand %p185, %p186
      %p188 = pneg %p187
      // Predicated region
      $region9: #{attention_forward.4} parent=5 // pred_check
        _
      $region10: #{attention_forward.4} parent=5 // pred_check_branch
        %190 = sbr.rel (%p187) target = $region12
      $region11: #{attention_forward.4} parent=5 // pred_region
        %s191 = ssub.s32 %s10, 1
      $region12: #{attention_forward.4} parent=5 // pred_fallthru
        _
      %p192 = scmp.lt.s32.totalorder %s10, 8
      // Predicated region
      $region13: #{attention_forward.4} parent=5 // pred_check
        %p193 = pneg %p192
      $region14: #{attention_forward.4} parent=5 // pred_check_branch
        %195 = sbr.rel (%p193) target = $region16
      $region15: #{attention_forward.4} parent=5 // pred_region
        // Predicated region
        $region17: #{attention_forward.4} parent=15 // pred_check
          %p196 = pneg %p53
        $region18: #{attention_forward.4} parent=15 // pred_check_branch
          %198 = sbr.rel (%p196) target = $region20
        $region19: #{attention_forward.4} parent=15 // pred_region
          %s199 = sand.u32 %s43, 1
          %s200 = sand.u32 %s43, 1
          %s201 = smul.addr %s200, 32
          %s202 = scalar_lea.vmem [#allocation2], %s201
          %s203 = smul.u32 4, %s19
          %s204 = smul.addr %s203, 6
          %s205 = sadd.s32 %s18, %s204
          %s206 = smul.addr %s17, 48
          %s207 = sadd.s32 %s205, %s206
          %s208 = smul.addr %s207, 8
          %s209 = scalar_lea.vmem %s0, %s208
          // Predicated region
          $region21: #{attention_forward.4} parent=19 // pred_check
            _
          $region22: #{attention_forward.4} parent=19 // pred_check_branch
            %211 = sbr.rel (0) target = $region24
          $region23: #{attention_forward.4} parent=19 // pred_region
            // Predicated region
            $region25: #{attention_forward.4} parent=23 // pred_check
              _
            $region26: #{attention_forward.4} parent=23 // pred_check_branch
              %213 = sbr.rel (0) target = $region28
            $region27: #{attention_forward.4} parent=23 // pred_region
              // Predicated region
              $region40: #{attention_forward.4} parent=27 // pred_check
                _
              $region41: #{attention_forward.4} parent=27 // pred_check_branch
                %234 = sbr.rel (0) target = $region43
              $region42: #{attention_forward.4} parent=27 // pred_region
                loop: start=0, step=1, limit=1
                $region44: #{attention_forward.4} parent=42 // loop_pre_header
                  _
                $region45: #{attention_forward.4} parent=42 // loop_header
                  %s236 = sphi 0, %s240
                  %p237 = scmp.ge.s32.totalorder %s236, 1
                  %s241 = sphi %s209, %s209
                  %s242 = sphi %s202, %s202
                $region46: #{attention_forward.4} parent=42 // loop_header_branch
                  %239 = sbr.rel (%p237) target = $region50
                $region47: #{attention_forward.4} parent=42 // loop_body
                  %v243 = vld [vmem:[%s241] sm:$0xff]
                  %244 = vst [vmem:[%s242] sm:$0xff] %v243
                  %v245 = vld [vmem:[%s241 + $0x30] sm:$0xff]
                  %246 = vst [vmem:[%s242 + $0x8] sm:$0xff] %v245
                  %v247 = vld [vmem:[%s241 + $0x60] sm:$0xff]
                  %248 = vst [vmem:[%s242 + $0x10] sm:$0xff] %v247
                  %v249 = vld [vmem:[%s241 + $0x90] sm:$0xff]
                  %250 = vst [vmem:[%s242 + $0x18] sm:$0xff] %v249
                $region48: #{attention_forward.4} parent=42 // loop_footer
                  %s240 = sadd.s32 1, %s236
                $region49: #{attention_forward.4} parent=42 // loop_footer_branch
                  %235 = sbr.rel target = $region45
                $region50: #{attention_forward.4} parent=42 // loop_exit
                  _
              $region43: #{attention_forward.4} parent=27 // pred_fallthru
                _
              // Predicated region
              $region51: #{attention_forward.4} parent=27 // pred_check
                _
              $region52: #{attention_forward.4} parent=27 // pred_check_branch
                %252 = sbr.rel target = $region54
              $region53: #{attention_forward.4} parent=27 // pred_region
                _
              $region54: #{attention_forward.4} parent=27 // pred_fallthru
                _
            $region28: #{attention_forward.4} parent=23 // pred_fallthru
              _
            // Predicated region
            $region29: #{attention_forward.4} parent=23 // pred_check
              _
            $region30: #{attention_forward.4} parent=23 // pred_check_branch
              %215 = sbr.rel target = $region32
            $region31: #{attention_forward.4} parent=23 // pred_region
              loop: start=0, step=1, limit=1
              $region33: #{attention_forward.4} parent=31 // loop_pre_header
                _
              $region34: #{attention_forward.4} parent=31 // loop_header
                %s218 = sphi 0, %s222
                %p219 = scmp.ge.s32.totalorder %s218, 1
                %s223 = sphi %s209, %s209
                %s224 = sphi %s202, %s202
              $region35: #{attention_forward.4} parent=31 // loop_header_branch
                %221 = sbr.rel (%p219) target = $region39
              $region36: #{attention_forward.4} parent=31 // loop_body
                %v225 = vld [vmem:[%s223] sm:$0xff]
                %226 = vst [vmem:[%s224] sm:$0xff] %v225
                %v227 = vld [vmem:[%s223 + $0x30] sm:$0xff]
                %228 = vst [vmem:[%s224 + $0x8] sm:$0xff] %v227
                %v229 = vld [vmem:[%s223 + $0x60] sm:$0xff]
                %230 = vst [vmem:[%s224 + $0x10] sm:$0xff] %v229
                %v231 = vld [vmem:[%s223 + $0x90] sm:$0xff]
                %232 = vst [vmem:[%s224 + $0x18] sm:$0xff] %v231
              $region37: #{attention_forward.4} parent=31 // loop_footer
                %s222 = sadd.s32 1, %s218
              $region38: #{attention_forward.4} parent=31 // loop_footer_branch
                %217 = sbr.rel target = $region34
              $region39: #{attention_forward.4} parent=31 // loop_exit
                _
            $region32: #{attention_forward.4} parent=23 // pred_fallthru
              _
          $region24: #{attention_forward.4} parent=19 // pred_fallthru
            _
          %253 = vnop
        $region20: #{attention_forward.4} parent=15 // pred_fallthru
          _
        // Predicated region
        $region55: #{attention_forward.4} parent=15 // pred_check
          %p254 = pneg %p83
        $region56: #{attention_forward.4} parent=15 // pred_check_branch
          %256 = sbr.rel (%p254) target = $region58
        $region57: #{attention_forward.4} parent=15 // pred_region
          %s257 = sand.u32 %s73, 1
          %s258 = sand.u32 %s73, 1
          %s259 = smul.addr %s258, 64
          %s260 = scalar_lea.vmem [#allocation3], %s259
          %s261 = sadd.s32 %s18, 2
          %s262 = smul.addr %s17, 48
          %s263 = sadd.s32 %s261, %s262
          %s264 = smul.addr %s263, 8
          %s265 = scalar_lea.vmem %s1, %s264
          // Predicated region
          $region59: #{attention_forward.4} parent=57 // pred_check
            _
          $region60: #{attention_forward.4} parent=57 // pred_check_branch
            %267 = sbr.rel (0) target = $region62
          $region61: #{attention_forward.4} parent=57 // pred_region
            // Predicated region
            $region63: #{attention_forward.4} parent=61 // pred_check
              _
            $region64: #{attention_forward.4} parent=61 // pred_check_branch
              %269 = sbr.rel (0) target = $region66
            $region65: #{attention_forward.4} parent=61 // pred_region
              // Predicated region
              $region78: #{attention_forward.4} parent=65 // pred_check
                _
              $region79: #{attention_forward.4} parent=65 // pred_check_branch
                %298 = sbr.rel (0) target = $region81
              $region80: #{attention_forward.4} parent=65 // pred_region
                loop: start=0, step=1, limit=1
                $region82: #{attention_forward.4} parent=80 // loop_pre_header
                  _
                $region83: #{attention_forward.4} parent=80 // loop_header
                  %s300 = sphi 0, %s304
                  %p301 = scmp.ge.s32.totalorder %s300, 1
                  %s305 = sphi %s265, %s265
                  %s306 = sphi %s260, %s260
                $region84: #{attention_forward.4} parent=80 // loop_header_branch
                  %303 = sbr.rel (%p301) target = $region88
                $region85: #{attention_forward.4} parent=80 // loop_body
                  %v307 = vld [vmem:[%s305] sm:$0xff]
                  %308 = vst [vmem:[%s306] sm:$0xff] %v307
                  %v309 = vld [vmem:[%s305 + $0x30] sm:$0xff]
                  %310 = vst [vmem:[%s306 + $0x8] sm:$0xff] %v309
                  %v311 = vld [vmem:[%s305 + $0x60] sm:$0xff]
                  %312 = vst [vmem:[%s306 + $0x10] sm:$0xff] %v311
                  %v313 = vld [vmem:[%s305 + $0x90] sm:$0xff]
                  %314 = vst [vmem:[%s306 + $0x18] sm:$0xff] %v313
                  %v315 = vld [vmem:[%s305 + $0xc0] sm:$0xff]
                  %316 = vst [vmem:[%s306 + $0x20] sm:$0xff] %v315
                  %v317 = vld [vmem:[%s305 + $0xf0] sm:$0xff]
                  %318 = vst [vmem:[%s306 + $0x28] sm:$0xff] %v317
                  %v319 = vld [vmem:[%s305 + $0x120] sm:$0xff]
                  %320 = vst [vmem:[%s306 + $0x30] sm:$0xff] %v319
                  %v321 = vld [vmem:[%s305 + $0x150] sm:$0xff]
                  %322 = vst [vmem:[%s306 + $0x38] sm:$0xff] %v321
                $region86: #{attention_forward.4} parent=80 // loop_footer
                  %s304 = sadd.s32 1, %s300
                $region87: #{attention_forward.4} parent=80 // loop_footer_branch
                  %299 = sbr.rel target = $region83
                $region88: #{attention_forward.4} parent=80 // loop_exit
                  _
              $region81: #{attention_forward.4} parent=65 // pred_fallthru
                _
              // Predicated region
              $region89: #{attention_forward.4} parent=65 // pred_check
                _
              $region90: #{attention_forward.4} parent=65 // pred_check_branch
                %324 = sbr.rel target = $region92
              $region91: #{attention_forward.4} parent=65 // pred_region
                _
              $region92: #{attention_forward.4} parent=65 // pred_fallthru
                _
            $region66: #{attention_forward.4} parent=61 // pred_fallthru
              _
            // Predicated region
            $region67: #{attention_forward.4} parent=61 // pred_check
              _
            $region68: #{attention_forward.4} parent=61 // pred_check_branch
              %271 = sbr.rel target = $region70
            $region69: #{attention_forward.4} parent=61 // pred_region
              loop: start=0, step=1, limit=1
              $region71: #{attention_forward.4} parent=69 // loop_pre_header
                _
              $region72: #{attention_forward.4} parent=69 // loop_header
                %s274 = sphi 0, %s278
                %p275 = scmp.ge.s32.totalorder %s274, 1
                %s279 = sphi %s265, %s265
                %s280 = sphi %s260, %s260
              $region73: #{attention_forward.4} parent=69 // loop_header_branch
                %277 = sbr.rel (%p275) target = $region77
              $region74: #{attention_forward.4} parent=69 // loop_body
                %v281 = vld [vmem:[%s279] sm:$0xff]
                %282 = vst [vmem:[%s280] sm:$0xff] %v281
                %v283 = vld [vmem:[%s279 + $0x30] sm:$0xff]
                %284 = vst [vmem:[%s280 + $0x8] sm:$0xff] %v283
                %v285 = vld [vmem:[%s279 + $0x60] sm:$0xff]
                %286 = vst [vmem:[%s280 + $0x10] sm:$0xff] %v285
                %v287 = vld [vmem:[%s279 + $0x90] sm:$0xff]
                %288 = vst [vmem:[%s280 + $0x18] sm:$0xff] %v287
                %v289 = vld [vmem:[%s279 + $0xc0] sm:$0xff]
                %290 = vst [vmem:[%s280 + $0x20] sm:$0xff] %v289
                %v291 = vld [vmem:[%s279 + $0xf0] sm:$0xff]
                %292 = vst [vmem:[%s280 + $0x28] sm:$0xff] %v291
                %v293 = vld [vmem:[%s279 + $0x120] sm:$0xff]
                %294 = vst [vmem:[%s280 + $0x30] sm:$0xff] %v293
                %v295 = vld [vmem:[%s279 + $0x150] sm:$0xff]
                %296 = vst [vmem:[%s280 + $0x38] sm:$0xff] %v295
              $region75: #{attention_forward.4} parent=69 // loop_footer
                %s278 = sadd.s32 1, %s274
              $region76: #{attention_forward.4} parent=69 // loop_footer_branch
                %273 = sbr.rel target = $region72
              $region77: #{attention_forward.4} parent=69 // loop_exit
                _
            $region70: #{attention_forward.4} parent=61 // pred_fallthru
              _
          $region62: #{attention_forward.4} parent=57 // pred_fallthru
            _
          %325 = vnop
        $region58: #{attention_forward.4} parent=15 // pred_fallthru
          _
        // Predicated region
        $region93: #{attention_forward.4} parent=15 // pred_check
          %p326 = pneg %p113
        $region94: #{attention_forward.4} parent=15 // pred_check_branch
          %328 = sbr.rel (%p326) target = $region96
        $region95: #{attention_forward.4} parent=15 // pred_region
          %s329 = sand.u32 %s103, 1
          %s330 = sand.u32 %s103, 1
          %s331 = smul.addr %s330, 64
          %s332 = scalar_lea.vmem [#allocation4], %s331
          %s333 = sadd.s32 %s18, 4
          %s334 = smul.addr %s17, 48
          %s335 = sadd.s32 %s333, %s334
          %s336 = smul.addr %s335, 8
          %s337 = scalar_lea.vmem %s2, %s336
          // Predicated region
          $region97: #{attention_forward.4} parent=95 // pred_check
            _
          $region98: #{attention_forward.4} parent=95 // pred_check_branch
            %339 = sbr.rel (0) target = $region100
          $region99: #{attention_forward.4} parent=95 // pred_region
            // Predicated region
            $region101: #{attention_forward.4} parent=99 // pred_check
              _
            $region102: #{attention_forward.4} parent=99 // pred_check_branch
              %341 = sbr.rel (0) target = $region104
            $region103: #{attention_forward.4} parent=99 // pred_region
              // Predicated region
              $region116: #{attention_forward.4} parent=103 // pred_check
                _
              $region117: #{attention_forward.4} parent=103 // pred_check_branch
                %370 = sbr.rel (0) target = $region119
              $region118: #{attention_forward.4} parent=103 // pred_region
                loop: start=0, step=1, limit=1
                $region120: #{attention_forward.4} parent=118 // loop_pre_header
                  _
                $region121: #{attention_forward.4} parent=118 // loop_header
                  %s372 = sphi 0, %s376
                  %p373 = scmp.ge.s32.totalorder %s372, 1
                  %s377 = sphi %s337, %s337
                  %s378 = sphi %s332, %s332
                $region122: #{attention_forward.4} parent=118 // loop_header_branch
                  %375 = sbr.rel (%p373) target = $region126
                $region123: #{attention_forward.4} parent=118 // loop_body
                  %v379 = vld [vmem:[%s377] sm:$0xff]
                  %380 = vst [vmem:[%s378] sm:$0xff] %v379
                  %v381 = vld [vmem:[%s377 + $0x30] sm:$0xff]
                  %382 = vst [vmem:[%s378 + $0x8] sm:$0xff] %v381
                  %v383 = vld [vmem:[%s377 + $0x60] sm:$0xff]
                  %384 = vst [vmem:[%s378 + $0x10] sm:$0xff] %v383
                  %v385 = vld [vmem:[%s377 + $0x90] sm:$0xff]
                  %386 = vst [vmem:[%s378 + $0x18] sm:$0xff] %v385
                  %v387 = vld [vmem:[%s377 + $0xc0] sm:$0xff]
                  %388 = vst [vmem:[%s378 + $0x20] sm:$0xff] %v387
                  %v389 = vld [vmem:[%s377 + $0xf0] sm:$0xff]
                  %390 = vst [vmem:[%s378 + $0x28] sm:$0xff] %v389
                  %v391 = vld [vmem:[%s377 + $0x120] sm:$0xff]
                  %392 = vst [vmem:[%s378 + $0x30] sm:$0xff] %v391
                  %v393 = vld [vmem:[%s377 + $0x150] sm:$0xff]
                  %394 = vst [vmem:[%s378 + $0x38] sm:$0xff] %v393
                $region124: #{attention_forward.4} parent=118 // loop_footer
                  %s376 = sadd.s32 1, %s372
                $region125: #{attention_forward.4} parent=118 // loop_footer_branch
                  %371 = sbr.rel target = $region121
                $region126: #{attention_forward.4} parent=118 // loop_exit
                  _
              $region119: #{attention_forward.4} parent=103 // pred_fallthru
                _
              // Predicated region
              $region127: #{attention_forward.4} parent=103 // pred_check
                _
              $region128: #{attention_forward.4} parent=103 // pred_check_branch
                %396 = sbr.rel target = $region130
              $region129: #{attention_forward.4} parent=103 // pred_region
                _
              $region130: #{attention_forward.4} parent=103 // pred_fallthru
                _
            $region104: #{attention_forward.4} parent=99 // pred_fallthru
              _
            // Predicated region
            $region105: #{attention_forward.4} parent=99 // pred_check
              _
            $region106: #{attention_forward.4} parent=99 // pred_check_branch
              %343 = sbr.rel target = $region108
            $region107: #{attention_forward.4} parent=99 // pred_region
              loop: start=0, step=1, limit=1
              $region109: #{attention_forward.4} parent=107 // loop_pre_header
                _
              $region110: #{attention_forward.4} parent=107 // loop_header
                %s346 = sphi 0, %s350
                %p347 = scmp.ge.s32.totalorder %s346, 1
                %s351 = sphi %s337, %s337
                %s352 = sphi %s332, %s332
              $region111: #{attention_forward.4} parent=107 // loop_header_branch
                %349 = sbr.rel (%p347) target = $region115
              $region112: #{attention_forward.4} parent=107 // loop_body
                %v353 = vld [vmem:[%s351] sm:$0xff]
                %354 = vst [vmem:[%s352] sm:$0xff] %v353
                %v355 = vld [vmem:[%s351 + $0x30] sm:$0xff]
                %356 = vst [vmem:[%s352 + $0x8] sm:$0xff] %v355
                %v357 = vld [vmem:[%s351 + $0x60] sm:$0xff]
                %358 = vst [vmem:[%s352 + $0x10] sm:$0xff] %v357
                %v359 = vld [vmem:[%s351 + $0x90] sm:$0xff]
                %360 = vst [vmem:[%s352 + $0x18] sm:$0xff] %v359
                %v361 = vld [vmem:[%s351 + $0xc0] sm:$0xff]
                %362 = vst [vmem:[%s352 + $0x20] sm:$0xff] %v361
                %v363 = vld [vmem:[%s351 + $0xf0] sm:$0xff]
                %364 = vst [vmem:[%s352 + $0x28] sm:$0xff] %v363
                %v365 = vld [vmem:[%s351 + $0x120] sm:$0xff]
                %366 = vst [vmem:[%s352 + $0x30] sm:$0xff] %v365
                %v367 = vld [vmem:[%s351 + $0x150] sm:$0xff]
                %368 = vst [vmem:[%s352 + $0x38] sm:$0xff] %v367
              $region113: #{attention_forward.4} parent=107 // loop_footer
                %s350 = sadd.s32 1, %s346
              $region114: #{attention_forward.4} parent=107 // loop_footer_branch
                %345 = sbr.rel target = $region110
              $region115: #{attention_forward.4} parent=107 // loop_exit
                _
            $region108: #{attention_forward.4} parent=99 // pred_fallthru
              _
          $region100: #{attention_forward.4} parent=95 // pred_fallthru
            _
          %397 = vnop
        $region96: #{attention_forward.4} parent=15 // pred_fallthru
          _
        // Predicated region
        $region131: #{attention_forward.4} parent=15 // pred_check
          %p398 = pneg %p141
        $region132: #{attention_forward.4} parent=15 // pred_check_branch
          %400 = sbr.rel (%p398) target = $region134
        $region133: #{attention_forward.4} parent=15 // pred_region
          %s401 = smul.u32 4, %s19
          %p402 = scmp.lt.s32.totalorder %s18, 1
          %s403 = scalar_select %p402, %s18, 1
          %p404 = scmp.lt.s32.totalorder %s401, 7
          %s405 = scalar_select %p404, %s401, 7
          %s406 = smul.addr %s403, 8
          %s407 = sadd.s32 %s405, %s406
          %s408 = smul.addr %s407, 8
          %s409 = scalar_lea.vmem %s3, %s408
          %s410 = smul.u32 4, %s19
        $region134: #{attention_forward.4} parent=15 // pred_fallthru
          _
      $region16: #{attention_forward.4} parent=5 // pred_fallthru
        _
      %p411 = scmp.le.s32.totalorder 1, %s10
      %p412 = scmp.lt.s32.totalorder %s10, 9
      %p413 = pnand %p411, %p412
      %p414 = pneg %p413
      // Predicated region
      $region135: #{attention_forward.4} parent=5 // pred_check
        _
      $region136: #{attention_forward.4} parent=5 // pred_check_branch
        %416 = sbr.rel (%p413) target = $region138
      $region137: #{attention_forward.4} parent=5 // pred_region
        %s417 = ssub.s32 %s10, 1
        %s418 = sand.u32 %s46, 1
        %s419 = sand.u32 %s46, 1
        %s420 = smul.addr %s419, 32
        %s421 = scalar_lea.vmem [#allocation2], %s420
        // Predicated region
        $region139: #{attention_forward.4} parent=137 // pred_check
          %p422 = pneg %p59
        $region140: #{attention_forward.4} parent=137 // pred_check_branch
          %424 = sbr.rel (%p422) target = $region142
        $region141: #{attention_forward.4} parent=137 // pred_region
          _
        $region142: #{attention_forward.4} parent=137 // pred_fallthru
          _
        %s425 = sand.u32 %s76, 1
        %s426 = sand.u32 %s76, 1
        %s427 = smul.addr %s426, 64
        %s428 = scalar_lea.vmem [#allocation3], %s427
        // Predicated region
        $region143: #{attention_forward.4} parent=137 // pred_check
          %p429 = pneg %p89
        $region144: #{attention_forward.4} parent=137 // pred_check_branch
          %431 = sbr.rel (%p429) target = $region146
        $region145: #{attention_forward.4} parent=137 // pred_region
          _
        $region146: #{attention_forward.4} parent=137 // pred_fallthru
          _
        %s432 = sand.u32 %s106, 1
        %s433 = sand.u32 %s106, 1
        %s434 = smul.addr %s433, 64
        %s435 = scalar_lea.vmem [#allocation4], %s434
        // Predicated region
        $region147: #{attention_forward.4} parent=137 // pred_check
          %p436 = pneg %p119
        $region148: #{attention_forward.4} parent=137 // pred_check_branch
          %438 = sbr.rel (%p436) target = $region150
        $region149: #{attention_forward.4} parent=137 // pred_region
          _
        $region150: #{attention_forward.4} parent=137 // pred_fallthru
          _
        %s439 = sand.u32 %s46, 1
        %s440 = sand.u32 %s46, 1
        %s441 = smul.addr %s440, 32
        %s442 = scalar_lea.vmem [#allocation2], %s441
        %p443 = pneg %p59
        %p444 = pneg %p56
        %s445 = sand.u32 %s76, 1
        %s446 = sand.u32 %s76, 1
        %s447 = smul.addr %s446, 64
        %s448 = scalar_lea.vmem [#allocation3], %s447
        %p449 = pneg %p89
        %p450 = pneg %p86
        %s451 = sand.u32 %s106, 1
        %s452 = sand.u32 %s106, 1
        %s453 = smul.addr %s452, 64
        %s454 = scalar_lea.vmem [#allocation4], %s453
        %p455 = pneg %p119
        %p456 = pneg %p116
        %s457 = smul.u32 4, %s22
        %p458 = scmp.lt.s32.totalorder %s21, 1
        %s459 = scalar_select %p458, %s21, 1
        %p460 = scmp.lt.s32.totalorder %s457, 7
        %s461 = scalar_select %p460, %s457, 7
        %s462 = smul.addr %s459, 8
        %s463 = sadd.s32 %s461, %s462
        %s464 = smul.addr %s463, 8
        %s465 = scalar_lea.vmem %s3, %s464
        %p466 = pneg %p147
        %p467 = pneg %p144
        %p468 = pneg %p177
        %p469 = pneg %p174
        %s470 = sand.u32 %s164, 1
        %s471 = sand.u32 %s164, 1
        %s472 = smul.addr %s471, 32
        %s473 = scalar_lea.vmem [#allocation5], %s472
        %s474 = smul.u32 4, %s22
        %s475 = sadd.s32 %s21, 2
        %s476 = sadd.s32 %s21, 4
        %s477 = smul.u32 4, %s22
        %p478 = scmp.lt.s32.totalorder %s21, 1
        %s479 = scalar_select %p478, %s21, 1
        %p480 = scmp.lt.s32.totalorder %s477, 7
        %s481 = scalar_select %p480, %s477, 7
        %s482 = smul.addr %s479, 8
        %s483 = sadd.s32 %s481, %s482
        %s484 = smul.addr %s483, 8
        %s485 = scalar_lea.vmem %s3, %s484
        %s486 = smul.u32 4, %s22
        %s487 = smul.u32 4, %s22
        %v488 = vld [vmem:[%s421] sm:$0xff]
        %v489 = vld [vmem:[%s421 + $0x8] sm:$0xff]
        %v490 = vld [vmem:[%s421 + $0x10] sm:$0xff]
        %v491 = vld [vmem:[%s421 + $0x18] sm:$0xff]
        %v492 = vmul.f32 %v488, 0.088388346
        %v493 = vmul.f32 %v489, 0.088388346
        %v494 = vmul.f32 %v490, 0.088388346
        %v495 = vmul.f32 %v491, 0.088388346
        %v496 = vld [vmem:[%s428] sm:$0xff]
        %v497 = vld [vmem:[%s428 + $0x8] sm:$0xff]
        %v498 = vld [vmem:[%s428 + $0x10] sm:$0xff]
        %v499 = vld [vmem:[%s428 + $0x18] sm:$0xff]
        %v500 = vld [vmem:[%s428 + $0x20] sm:$0xff]
        %v501 = vld [vmem:[%s428 + $0x28] sm:$0xff]
        %v502 = vld [vmem:[%s428 + $0x30] sm:$0xff]
        %v503 = vld [vmem:[%s428 + $0x38] sm:$0xff]
        %v504 = vld [vmem:[%s435] sm:$0xff]
        %v505 = vld [vmem:[%s435 + $0x8] sm:$0xff]
        %v506 = vld [vmem:[%s435 + $0x10] sm:$0xff]
        %v507 = vld [vmem:[%s435 + $0x18] sm:$0xff]
        %v508 = vld [vmem:[%s435 + $0x20] sm:$0xff]
        %v509 = vld [vmem:[%s435 + $0x28] sm:$0xff]
        %v510 = vld [vmem:[%s435 + $0x30] sm:$0xff]
        %v511 = vld [vmem:[%s435 + $0x38] sm:$0xff]
        %v512 = vld [vmem:[%s485] sm:$0xff]
        %v513 = vld [vmem:[%s485 + $0x8] sm:$0xff]
        %v514 = vld [vmem:[%s485 + $0x10] sm:$0xff]
        %v515 = vld [vmem:[%s485 + $0x18] sm:$0xff]
        %516 = vmatprep.subr.mxu0 0.0
        %517 = vmatpush1.xpose.msra.mxu0 %v496
        %518 = vmatprep.subr.mxu0 0.0
        %519 = vmatpush1.xpose.msra.mxu0 %v497
        %520 = vmatprep.subr.mxu0 0.0
        %521 = vmatpush1.xpose.msra.mxu0 %v498
        %522 = vmatprep.subr.mxu0 0.0
        %523 = vmatpush1.xpose.msra.mxu0 %v499
        %524 = vmatprep.subr.mxu0 0.0
        %525 = vmatpush1.xpose.msra.mxu0 %v500
        %526 = vmatprep.subr.mxu0 0.0
        %527 = vmatpush1.xpose.msra.mxu0 %v501
        %528 = vmatprep.subr.mxu0 0.0
        %529 = vmatpush1.xpose.msra.mxu0 %v502
        %530 = vmatprep.subr.mxu0 0.0
        %531 = vmatpush1.xpose.msra.mxu0 %v503
        %532 = vmatprep.subr.mxu0 0.0
        %533 = vmatpush1.xpose.msra.mxu0 0.0
        %534 = vmatprep.subr.mxu0 0.0
        %535 = vmatpush1.xpose.msra.mxu0 0.0
        %536 = vmatprep.subr.mxu0 0.0
        %537 = vmatpush1.xpose.msra.mxu0 0.0
        %538 = vmatprep.subr.mxu0 0.0
        %539 = vmatpush1.xpose.msra.mxu0 0.0
        %540 = vmatprep.subr.mxu0 0.0
        %541 = vmatpush1.xpose.msra.mxu0 0.0
        %542 = vmatprep.subr.mxu0 0.0
        %543 = vmatpush1.xpose.msra.mxu0 0.0
        %544 = vmatprep.subr.mxu0 0.0
        %545 = vmatpush1.xpose.msra.mxu0 0.0
        %546 = vmatprep.subr.mxu0 0.0
        %547 = vmatpush1.xpose.msra.mxu0 0.0
        %548 = vmatprep.subr.mxu0 0.0
        %549 = vmatpush1.xpose.msra.mxu0 0.0
        %550 = vmatprep.subr.mxu0 0.0
        %551 = vmatpush1.xpose.msra.mxu0 0.0
        %552 = vmatprep.subr.mxu0 0.0
        %553 = vmatpush1.xpose.msra.mxu0 0.0
        %554 = vmatprep.subr.mxu0 0.0
        %555 = vmatpush1.xpose.msra.mxu0 0.0
        %556 = vmatprep.subr.mxu0 0.0
        %557 = vmatpush1.xpose.msra.mxu0 0.0
        %558 = vmatprep.subr.mxu0 0.0
        %559 = vmatpush1.xpose.msra.mxu0 0.0
        %560 = vmatprep.subr.mxu0 0.0
        %561 = vmatpush1.xpose.msra.mxu0 0.0
        %562 = vmatprep.subr.mxu0 0.0
        %563 = vmatpush1.xpose.msra.mxu0 0.0
        %564 = vmatprep.subr.mxu0 0.0
        %565 = vmatpush1.xpose.msra.mxu0 0.0
        %566 = vmatprep.subr.mxu0 0.0
        %567 = vmatpush1.xpose.msra.mxu0 0.0
        %568 = vmatprep.subr.mxu0 0.0
        %569 = vmatpush1.xpose.msra.mxu0 0.0
        %570 = vmatprep.subr.mxu0 0.0
        %571 = vmatpush1.xpose.msra.mxu0 0.0
        %572 = vmatprep.subr.mxu0 0.0
        %573 = vmatpush1.xpose.msra.mxu0 0.0
        %574 = vmatprep.subr.mxu0 0.0
        %575 = vmatpush1.xpose.msra.mxu0 0.0
        %576 = vmatprep.subr.mxu0 0.0
        %577 = vmatpush1.xpose.msra.mxu0 0.0
        %578 = vmatprep.subr.mxu0 0.0
        %579 = vmatpush1.xpose.msra.mxu0 0.0
        %580 = vmatprep.mubr.f32.mxu0 0.0
        %581 = vmatmul.mubr.f32.gmra.mrb[0].mxu0 %v492
        %v582 = vpop.f32.mrb[0].mxu0
        %v583 = vadd.f32 %v512, %v582
        %v584 = vpop.f32.mrb[0].mxu0
        %585 = vmatprep.mubr.f32.mxu0 0.0
        %586 = vmatmul.mubr.f32.gmra.mrb[0].mxu0 %v493
        %v587 = vpop.f32.mrb[0].mxu0
        %v588 = vadd.f32 %v513, %v587
        %v589 = vpop.f32.mrb[0].mxu0
        %590 = vmatprep.mubr.f32.mxu0 0.0
        %591 = vmatmul.mubr.f32.gmra.mrb[0].mxu0 %v494
        %v592 = vpop.f32.mrb[0].mxu0
        %v593 = vadd.f32 %v514, %v592
        %v594 = vpop.f32.mrb[0].mxu0
        %595 = vmatprep.mubr.f32.mxu0 0.0
        %596 = vmatmul.mubr.f32.gmra.mrb[0].mxu0 %v495
        %v597 = vpop.f32.mrb[0].mxu0
        %v598 = vadd.f32 %v515, %v597
        %v599 = vpop.f32.mrb[0].mxu0
        %600 = vdwg.mxu0
        %vm601 = vcmask 523264
        %v602 = vsel %vm601, %v583, -inf
        %603 = vmax.xlane.f32.xlu0 %v602
        %v604 = vpop.xlane.xlu0 %603
        %v605 = vsel %vm601, %v588, -inf
        %606 = vmax.xlane.f32.xlu0 %v605
        %v607 = vpop.xlane.xlu0 %606
        %v608 = vsel %vm601, %v593, -inf
        %609 = vmax.xlane.f32.xlu0 %v608
        %v610 = vpop.xlane.xlu0 %609
        %v611 = vsel %vm601, %v598, -inf
        %612 = vmax.xlane.f32.xlu0 %v611
        %v613 = vpop.xlane.xlu0 %612
        %v614 = vsub.f32 %v583, %v604
        %v615 = vsub.f32 %v588, %v607
        %v616 = vsub.f32 %v593, %v610
        %v617 = vsub.f32 %v598, %v613
        %v618 = vmul.f32 %v614, 1.442695
        %v619 = vpow.pop %v618
        %v620 = vmul.f32 %v615, 1.442695
        %v621 = vpow.pop %v620
        %v622 = vmul.f32 %v616, 1.442695
        %v623 = vpow.pop %v622
        %v624 = vmul.f32 %v617, 1.442695
        %v625 = vpow.pop %v624
        %v626 = vsel %vm601, %v619, 0.0
        %627 = vadd.xlane.f32.xlu0 %v626
        %v628 = vpop.xlane.xlu0 %627
        %v629 = vsel %vm601, %v621, 0.0
        %630 = vadd.xlane.f32.xlu0 %v629
        %v631 = vpop.xlane.xlu0 %630
        %v632 = vsel %vm601, %v623, 0.0
        %633 = vadd.xlane.f32.xlu0 %v632
        %v634 = vpop.xlane.xlu0 %633
        %v635 = vsel %vm601, %v625, 0.0
        %636 = vadd.xlane.f32.xlu0 %v635
        %v637 = vpop.xlane.xlu0 %636
        %v639 = vsel %vm601, %v619, 0
        %v642 = vsel %vm601, %v621, 0
        %v645 = vsel %vm601, %v623, 0
        %v648 = vsel %vm601, %v625, 0
        %650 = vmatprep.subr.mxu0 0.0
        %651 = vmatpush1.msra.mxu0 %v504
        %652 = vmatprep.subr.mxu0 0.0
        %653 = vmatpush1.msra.mxu0 %v505
        %654 = vmatprep.subr.mxu0 0.0
        %655 = vmatpush1.msra.mxu0 %v506
        %656 = vmatprep.subr.mxu0 0.0
        %657 = vmatpush1.msra.mxu0 %v507
        %658 = vmatprep.subr.mxu0 0.0
        %659 = vmatpush1.msra.mxu0 %v508
        %660 = vmatprep.subr.mxu0 0.0
        %661 = vmatpush1.msra.mxu0 %v509
        %662 = vmatprep.subr.mxu0 0.0
        %663 = vmatpush1.msra.mxu0 %v510
        %664 = vmatprep.subr.mxu0 0.0
        %665 = vmatpush1.msra.mxu0 %v511
        %666 = vmatprep.subr.mxu0 0.0
        %667 = vmatpush1.msra.mxu0 0.0
        %668 = vmatprep.subr.mxu0 0.0
        %669 = vmatpush1.msra.mxu0 0.0
        %670 = vmatprep.subr.mxu0 0.0
        %671 = vmatpush1.msra.mxu0 0.0
        %672 = vmatprep.subr.mxu0 0.0
        %673 = vmatpush1.msra.mxu0 0.0
        %674 = vmatprep.subr.mxu0 0.0
        %675 = vmatpush1.msra.mxu0 0.0
        %676 = vmatprep.subr.mxu0 0.0
        %677 = vmatpush1.msra.mxu0 0.0
        %678 = vmatprep.subr.mxu0 0.0
        %679 = vmatpush1.msra.mxu0 0.0
        %680 = vmatprep.subr.mxu0 0.0
        %681 = vmatpush1.msra.mxu0 0.0
        %682 = vmatprep.subr.mxu0 0.0
        %683 = vmatpush1.msra.mxu0 0.0
        %684 = vmatprep.subr.mxu0 0.0
        %685 = vmatpush1.msra.mxu0 0.0
        %686 = vmatprep.subr.mxu0 0.0
        %687 = vmatpush1.msra.mxu0 0.0
        %688 = vmatprep.subr.mxu0 0.0
        %689 = vmatpush1.msra.mxu0 0.0
        %690 = vmatprep.subr.mxu0 0.0
        %691 = vmatpush1.msra.mxu0 0.0
        %692 = vmatprep.subr.mxu0 0.0
        %693 = vmatpush1.msra.mxu0 0.0
        %694 = vmatprep.subr.mxu0 0.0
        %695 = vmatpush1.msra.mxu0 0.0
        %696 = vmatprep.subr.mxu0 0.0
        %697 = vmatpush1.msra.mxu0 0.0
        %698 = vmatprep.subr.mxu0 0.0
        %699 = vmatpush1.msra.mxu0 0.0
        %700 = vmatprep.subr.mxu0 0.0
        %701 = vmatpush1.msra.mxu0 0.0
        %702 = vmatprep.subr.mxu0 0.0
        %703 = vmatpush1.msra.mxu0 0.0
        %704 = vmatprep.subr.mxu0 0.0
        %705 = vmatpush1.msra.mxu0 0.0
        %706 = vmatprep.subr.mxu0 0.0
        %707 = vmatpush1.msra.mxu0 0.0
        %708 = vmatprep.subr.mxu0 0.0
        %709 = vmatpush1.msra.mxu0 0.0
        %710 = vmatprep.subr.mxu0 0.0
        %711 = vmatpush1.msra.mxu0 0.0
        %712 = vmatprep.subr.mxu0 0.0
        %713 = vmatpush1.msra.mxu0 0.0
        %714 = vmatprep.mubr.f32.mxu0 0.0
        %715 = vmatmul.mubr.f32.gmra.mrb[0].mxu0 %v639
        %v716 = vpop.f32.mrb[0].mxu0
        %v717 = vadd.f32 0.0, %v716
        %v718 = vpop.f32.mrb[0].mxu0
        %719 = vmatprep.mubr.f32.mxu0 0.0
        %720 = vmatmul.mubr.f32.gmra.mrb[0].mxu0 %v642
        %v721 = vpop.f32.mrb[0].mxu0
        %v722 = vadd.f32 0.0, %v721
        %v723 = vpop.f32.mrb[0].mxu0
        %724 = vmatprep.mubr.f32.mxu0 0.0
        %725 = vmatmul.mubr.f32.gmra.mrb[0].mxu0 %v645
        %v726 = vpop.f32.mrb[0].mxu0
        %v727 = vadd.f32 0.0, %v726
        %v728 = vpop.f32.mrb[0].mxu0
        %729 = vmatprep.mubr.f32.mxu0 0.0
        %730 = vmatmul.mubr.f32.gmra.mrb[0].mxu0 %v648
        %v731 = vpop.f32.mrb[0].mxu0
        %v732 = vadd.f32 0.0, %v731
        %v733 = vpop.f32.mrb[0].mxu0
        %734 = vdwg.mxu0
        %v735 = vrcp.pop %v628
        %v736 = vrcp.pop %v631
        %v737 = vrcp.pop %v634
        %v738 = vrcp.pop %v637
        %v739 = vmul.f32 %v717, %v735
        %v740 = vmul.f32 %v722, %v736
        %v741 = vmul.f32 %v727, %v737
        %v742 = vmul.f32 %v732, %v738
        %743 = vst [vmem:[%s473] sm:$0xff] %v739
        %744 = vst [vmem:[%s473 + $0x8] sm:$0xff] %v740
        %745 = vst [vmem:[%s473 + $0x10] sm:$0xff] %v741
        %746 = vst [vmem:[%s473 + $0x18] sm:$0xff] %v742
        %s747 = sand.u32 %s164, 1
        %s748 = sand.u32 %s164, 1
        %s749 = smul.addr %s748, 32
        %s750 = scalar_lea.vmem [#allocation5], %s749
        // Predicated region
        $region151: #{attention_forward.4} parent=137 // pred_check
          %p751 = pneg %p174
        $region152: #{attention_forward.4} parent=137 // pred_check_branch
          %753 = sbr.rel (%p751) target = $region154
        $region153: #{attention_forward.4} parent=137 // pred_region
          %s754 = smul.u32 4, %s22
          %s755 = smul.addr %s754, 2
          %s756 = sadd.s32 %s21, %s755
          %s757 = smul.addr %s20, 16
          %s758 = sadd.s32 %s756, %s757
          %s759 = smul.addr %s758, 8
          %s760 = scalar_lea.vmem %s4, %s759
          // Predicated region
          $region155: #{attention_forward.4} parent=153 // pred_check
            _
          $region156: #{attention_forward.4} parent=153 // pred_check_branch
            %762 = sbr.rel (0) target = $region158
          $region157: #{attention_forward.4} parent=153 // pred_region
            // Predicated region
            $region159: #{attention_forward.4} parent=157 // pred_check
              _
            $region160: #{attention_forward.4} parent=157 // pred_check_branch
              %764 = sbr.rel (0) target = $region162
            $region161: #{attention_forward.4} parent=157 // pred_region
              // Predicated region
              $region174: #{attention_forward.4} parent=161 // pred_check
                _
              $region175: #{attention_forward.4} parent=161 // pred_check_branch
                %785 = sbr.rel (0) target = $region177
              $region176: #{attention_forward.4} parent=161 // pred_region
                loop: start=0, step=1, limit=1
                $region178: #{attention_forward.4} parent=176 // loop_pre_header
                  _
                $region179: #{attention_forward.4} parent=176 // loop_header
                  %s787 = sphi 0, %s791
                  %p788 = scmp.ge.s32.totalorder %s787, 1
                  %s792 = sphi %s750, %s750
                  %s793 = sphi %s760, %s760
                $region180: #{attention_forward.4} parent=176 // loop_header_branch
                  %790 = sbr.rel (%p788) target = $region184
                $region181: #{attention_forward.4} parent=176 // loop_body
                  %v794 = vld [vmem:[%s792] sm:$0xff]
                  %795 = vst [vmem:[%s793] sm:$0xff] %v794
                  %v796 = vld [vmem:[%s792 + $0x8] sm:$0xff]
                  %797 = vst [vmem:[%s793 + $0x10] sm:$0xff] %v796
                  %v798 = vld [vmem:[%s792 + $0x10] sm:$0xff]
                  %799 = vst [vmem:[%s793 + $0x20] sm:$0xff] %v798
                  %v800 = vld [vmem:[%s792 + $0x18] sm:$0xff]
                  %801 = vst [vmem:[%s793 + $0x30] sm:$0xff] %v800
                $region182: #{attention_forward.4} parent=176 // loop_footer
                  %s791 = sadd.s32 1, %s787
                $region183: #{attention_forward.4} parent=176 // loop_footer_branch
                  %786 = sbr.rel target = $region179
                $region184: #{attention_forward.4} parent=176 // loop_exit
                  _
              $region177: #{attention_forward.4} parent=161 // pred_fallthru
                _
              // Predicated region
              $region185: #{attention_forward.4} parent=161 // pred_check
                _
              $region186: #{attention_forward.4} parent=161 // pred_check_branch
                %803 = sbr.rel target = $region188
              $region187: #{attention_forward.4} parent=161 // pred_region
                _
              $region188: #{attention_forward.4} parent=161 // pred_fallthru
                _
            $region162: #{attention_forward.4} parent=157 // pred_fallthru
              _
            // Predicated region
            $region163: #{attention_forward.4} parent=157 // pred_check
              _
            $region164: #{attention_forward.4} parent=157 // pred_check_branch
              %766 = sbr.rel target = $region166
            $region165: #{attention_forward.4} parent=157 // pred_region
              loop: start=0, step=1, limit=1
              $region167: #{attention_forward.4} parent=165 // loop_pre_header
                _
              $region168: #{attention_forward.4} parent=165 // loop_header
                %s769 = sphi 0, %s773
                %p770 = scmp.ge.s32.totalorder %s769, 1
                %s774 = sphi %s750, %s750
                %s775 = sphi %s760, %s760
              $region169: #{attention_forward.4} parent=165 // loop_header_branch
                %772 = sbr.rel (%p770) target = $region173
              $region170: #{attention_forward.4} parent=165 // loop_body
                %v776 = vld [vmem:[%s774] sm:$0xff]
                %777 = vst [vmem:[%s775] sm:$0xff] %v776
                %v778 = vld [vmem:[%s774 + $0x8] sm:$0xff]
                %779 = vst [vmem:[%s775 + $0x10] sm:$0xff] %v778
                %v780 = vld [vmem:[%s774 + $0x10] sm:$0xff]
                %781 = vst [vmem:[%s775 + $0x20] sm:$0xff] %v780
                %v782 = vld [vmem:[%s774 + $0x18] sm:$0xff]
                %783 = vst [vmem:[%s775 + $0x30] sm:$0xff] %v782
              $region171: #{attention_forward.4} parent=165 // loop_footer
                %s773 = sadd.s32 1, %s769
              $region172: #{attention_forward.4} parent=165 // loop_footer_branch
                %768 = sbr.rel target = $region168
              $region173: #{attention_forward.4} parent=165 // loop_exit
                _
            $region166: #{attention_forward.4} parent=157 // pred_fallthru
              _
          $region158: #{attention_forward.4} parent=153 // pred_fallthru
            _
          %804 = vnop
        $region154: #{attention_forward.4} parent=137 // pred_fallthru
          _
      $region138: #{attention_forward.4} parent=5 // pred_fallthru
        _
      %p805 = scmp.le.s32.totalorder 2, %s10
      // Predicated region
      $region189: #{attention_forward.4} parent=5 // pred_check
        %p806 = pneg %p805
      $region190: #{attention_forward.4} parent=5 // pred_check_branch
        %808 = sbr.rel (%p806) target = $region192
      $region191: #{attention_forward.4} parent=5 // pred_region
        %s809 = ssub.s32 %s10, 2
        // Predicated region
        $region193: #{attention_forward.4} parent=191 // pred_check
          %p810 = pneg %p180
        $region194: #{attention_forward.4} parent=191 // pred_check_branch
          %812 = sbr.rel (%p810) target = $region196
        $region195: #{attention_forward.4} parent=191 // pred_region
          %s813 = sand.u32 %s165, 1
          %s814 = sand.u32 %s165, 1
          %s815 = smul.addr %s814, 32
          %s816 = scalar_lea.vmem [#allocation5], %s815
        $region196: #{attention_forward.4} parent=191 // pred_fallthru
          _
      $region192: #{attention_forward.4} parent=5 // pred_fallthru
        _
    $region6: #{attention_forward.4} parent=1 // loop_footer
      %s14 = sadd.s32 1, %s10
    $region7: #{attention_forward.4} parent=1 // loop_footer_branch
      %9 = sbr.rel target = $region3
    $region8: #{attention_forward.4} parent=1 // loop_exit
      _

</llo_original>
